<compile_context>
chip_gen: v5e
topology: v5e:2x2
jax: 0.10.0
libtpu: 0.0.40
codegen_flags: <defaults>
</compile_context>

<pallas_src>
import functools

import numpy as np
import jax
import jax.numpy as jnp
from jax.experimental import pallas as pl
from jax.experimental.pallas import tpu as pltpu


def _round_up(n, m):
    return -(-n // m) * m


# ----------------------------------------------------------------------------
# Pallas kernel
# ----------------------------------------------------------------------------
def _pool_group_max(x, c):
    """x: (n, 4*c) f32 with 4 contiguous lane groups of width c (one per 2x2
    pool offset).  Returns (n, c) elementwise max over the 4 groups using XLU
    lane rotations, so only offset-0 lane slices are needed."""
    m = jnp.maximum(x, pltpu.roll(x, shift=c, axis=1))
    m = jnp.maximum(m, pltpu.roll(m, shift=2 * c, axis=1))
    return m[:, :c]


def _ltc_fused_kernel(cols1_ref, mask_ref, w1m_ref, b1_ref, w2m_ref, b2_ref,
                      wd1_ref, bd1_ref, win_ref, bltc_ref, wout_ref, bout_ref,
                      o_ref, *, batch, Wd, Hp2, Wp2, group):
    # cols1:(NR,16*Cin) mask:(NR,1)   w1m:(16*Cin,4*C1) b1:(1,C1)
    # w2m:(16*C1,4*C2)  b2:(1,C2)     wd1:(Hp2*Wp2*C2,128) bd1:(1,128)
    # win:(128,UP)      bltc:(1,UP)   wout:(UP,ncp)     bout:(1,ncp) o:(B,ncp)
    f32, bf16 = jnp.float32, jnp.bfloat16
    C1 = b1_ref.shape[1]            # conv1 channels (32)
    C2 = b2_ref.shape[1]            # conv2 channels (64)

    # ---- stage 1: maxpool2x2(relu(conv1(x))) as one lane-dense matmul ------
    # Rows cover the conv2-'SAME'-padded pooled grid in parity-major order;
    # pad/guard rows are zeroed by `mask` so conv2 sees proper zero padding.
    pre1 = jnp.dot(cols1_ref[...], w1m_ref[...], preferred_element_type=f32)
    y1 = jnp.maximum(_pool_group_max(pre1, C1) + b1_ref[...], 0.0)
    y1p = (y1 * mask_ref[...]).astype(bf16)                  # (NR, C1)

    # ---- stage 2: maxpool2x2(relu(conv2(y1))) as ONE K=16*C1 matmul --------
    # The parity-major layout turns every 4x4-window offset (oy, ox) into a
    # contiguous, statically-known row slice of y1p (all starts even, so bf16
    # sublane pairs stay intact).  The 16 slices are lane-concatenated and hit
    # the MXU once (K=512) instead of 16 tiny K=32 matmuls.
    slabs = []
    for oy in range(4):
        for ox in range(4):
            start = (((oy % 2) * 2 + (ox % 2)) * group
                     + ((oy // 2) * Wd + (ox // 2)) * batch)
            slabs.append(y1p[start:start + group, :])
    cols2 = jnp.concatenate(slabs, axis=1)                   # (group, 16*C1)
    pre2 = jnp.dot(cols2, w2m_ref[...], preferred_element_type=f32)
    y2 = jnp.maximum(_pool_group_max(pre2, C2) + b2_ref[...], 0.0)
    y2 = y2.astype(bf16)                                     # (group, C2)

    # ---- flatten (h, w, c) + dense1 + relu as ONE K=Hp2*Wp2*C2 matmul ------
    # Batch-major (B, T*C2) operand; rows with p2==Hd-1 / q2==Wd-1 in y2 are
    # garbage rows of the parity grid and are never sliced here.
    feats = jnp.concatenate(
        [y2[(p2 * Wd + q2) * batch:(p2 * Wd + q2) * batch + batch, :]
         for p2 in range(Hp2) for q2 in range(Wp2)], axis=1)  # (B, T*C2)
    h1 = jnp.maximum(
        jnp.dot(feats, wd1_ref[...], preferred_element_type=f32)
        + bd1_ref[...], 0.0)                                  # (B, 128)

    # ---- LTC cell, single step, h0 = 0 -------------------------------------
    # TODO(synk): LTCCell source is not provided; assumed standard update
    #   h' = h0 + dt*(-h0/tau + tanh(W_in x + W_rec h0 + b)), dt = 1.
    # With h0 = 0 the w_rec matmul and -h0/tau leak vanish identically, so the
    # kernel never loads w_rec / tau.
    h = jnp.tanh(jnp.dot(h1.astype(bf16), win_ref[...],
                         preferred_element_type=f32) + bltc_ref[...])

    # ---- output layer (lane-dense, padded to 128 columns) ------------------
    o_ref[...] = (jnp.dot(h.astype(bf16), wout_ref[...],
                          preferred_element_type=f32) + bout_ref[...])


def _full_spec(shape):
    return pl.BlockSpec(shape, lambda i: (0,) * len(shape))


# ----------------------------------------------------------------------------
# Host-side glue: stage-1 im2col in the padded parity-major layout, merged
# (conv+pool) weights.
# ----------------------------------------------------------------------------
def build_stage1_inputs(x_nhwc, pool=2, ksize=3, pad=1):
    """Stage-1 im2col over the conv2-'SAME'-padded pooled grid, rows ordered
    ((ip%2, jp%2), ip//2, jp//2, b).  Interior row (b, ip, jp) holds the 4x4
    input window of stage-1 pooled output (ip-1, jp-1); pad/guard rows are
    all-zero and flagged with mask=0 so the kernel zeroes them after bias+relu
    (conv2's zero padding).  Guard rows keep the in-kernel window slices in
    bounds."""
    B, H, W, C = x_nhwc.shape
    Hp1, Wp1 = H // pool, W // pool            # pooled grid after stage 1
    Hpad, Wpad = Hp1 + 2 * pad, Wp1 + 2 * pad  # conv2 'SAME' padded grid
    assert Hpad % 2 == 0 and Wpad % 2 == 0, "even pooled spatial dims expected"
    Hd, Wd = Hpad // 2, Wpad // 2              # parity-decimated grid
    Hp2, Wp2 = Hp1 // pool, Wp1 // pool        # pooled grid after stage 2
    R = pool + ksize - 1                       # 4x4 window per pooled output
    group = Hd * Wd * B                        # rows per parity group
    NR = _round_up(4 * group + (Wd + 1) * B, 8)

    # windows[b, i, j, oy, ox, c] = xpad[b, 2*i + oy, 2*j + ox, c]
    xp = jnp.pad(x_nhwc, ((0, 0), (pad, pad), (pad, pad), (0, 0)))
    rows = []
    for oy in range(R):
        cs = []
        for ox in range(R):
            cs.append(xp[:, oy:oy + pool * Hp1:pool,
                         ox:ox + pool * Wp1:pool, :])
        rows.append(jnp.stack(cs, axis=3))
    win = jnp.stack(rows, axis=3).reshape(B * Hp1 * Wp1, R * R * C)
    win = jnp.concatenate([win, jnp.zeros((1, R * R * C), win.dtype)], axis=0)

    # Vectorized permutation into the padded parity-major layout (no Python
    # per-element loops; executed as a single gather).
    bb, ii, jj = np.meshgrid(np.arange(B), np.arange(Hp1), np.arange(Wp1),
                             indexing='ij')
    ip, jp = ii + pad, jj + pad
    dest = ((((ip % 2) * 2 + (jp % 2)) * (Hd * Wd)
             + (ip // 2) * Wd + (jp // 2)) * B + bb).reshape(-1)
    src = np.full((NR,), B * Hp1 * Wp1, np.int32)   # default -> zero row
    src[dest] = np.arange(B * Hp1 * Wp1, dtype=np.int32)
    cols1 = win[src]                                # (NR, R*R*C)
    mask = jnp.asarray((src != B * Hp1 * Wp1).astype(np.float32)[:, None])
    return cols1, mask, dict(Wd=Wd, Hp2=Hp2, Wp2=Wp2, group=group)


def expand_merge_conv_weight(w_oihw, pool=2):
    """(Cout, Cin, 3, 3) -> (R*R*Cin, 4*Cout): column block g = (dy, dx) holds
    the expanded 3x3-conv matrix for 2x2-pool offset (dy, dx); rows ordered
    (oy, ox, cin) to match the window-column / window-slice ordering."""
    Cout, Cin, kh, kw = w_oihw.shape
    R = pool + kh - 1
    w = np.asarray(w_oihw, np.float32)
    wexp = np.zeros((pool * pool, R * R * Cin, Cout), np.float32)
    for dy in range(pool):
        for dx in range(pool):
            block = np.zeros((R, R, Cin, Cout), np.float32)
            for ky in range(kh):
                for kx in range(kw):
                    block[dy + ky, dx + kx] = w[:, :, ky, kx].T  # (Cin, Cout)
            wexp[dy * pool + dx] = block.reshape(R * R * Cin, Cout)
    merged = np.transpose(wexp, (1, 0, 2)).reshape(R * R * Cin,
                                                   pool * pool * Cout)
    return jnp.asarray(merged)


def init_params(key, in_ch, H, W, units, num_classes):
    ks = jax.random.split(key, 10)

    def unif(k, shape, fan_in):
        bound = 1.0 / float(fan_in) ** 0.5
        return jax.random.uniform(k, shape, jnp.float32, -bound, bound)

    w_conv1 = unif(ks[0], (32, in_ch, 3, 3), in_ch * 9)
    b_conv1 = unif(ks[1], (1, 32), in_ch * 9)
    w_conv2 = unif(ks[2], (64, 32, 3, 3), 32 * 9)
    b_conv2 = unif(ks[3], (1, 64), 32 * 9)
    dense_in = 64 * (H // 4) * (W // 4)
    # NOTE: flatten order is (H, W, C) while PyTorch uses (C, H, W); the fixed
    # permutation is absorbed into this deterministic init of w_dense1.
    return dict(
        w_conv1=w_conv1, b_conv1=b_conv1,
        w_conv2=w_conv2, b_conv2=b_conv2,
        w1m=expand_merge_conv_weight(w_conv1),
        w2m=expand_merge_conv_weight(w_conv2),
        w_dense1=unif(ks[4], (dense_in, 128), dense_in),
        b_dense1=unif(ks[5], (1, 128), dense_in),
        w_in=unif(ks[6], (128, units), 128),
        w_rec=unif(ks[7], (units, units), units),  # dead for h0=0 (ref only)
        b_ltc=jnp.zeros((1, units), jnp.float32),
        tau=jnp.ones((1, units), jnp.float32),     # dead for h0=0 (ref only)
        w_out=unif(ks[8], (units, num_classes), units),
        b_out=unif(ks[9], (1, num_classes), units),
    )


def ltc_model_forward(params, x_nchw):
    B = x_nchw.shape[0]
    bf16 = jnp.bfloat16
    U, nc = params['w_out'].shape
    ncp = _round_up(nc, 128)
    UP = _round_up(U, 128)

    x = jnp.transpose(x_nchw, (0, 2, 3, 1))                  # NCHW -> NHWC
    cols1, mask, dims = build_stage1_inputs(x)

    # Pad the LTC hidden width to 128 lanes; padding contributes exactly zero.
    w_in_p = jnp.pad(params['w_in'], ((0, 0), (0, UP - U)))
    b_ltc_p = jnp.pad(params['b_ltc'], ((0, 0), (0, UP - U)))
    w_out_p = jnp.pad(params['w_out'], ((0, UP - U), (0, ncp - nc)))
    b_out_p = jnp.pad(params['b_out'], ((0, 0), (0, ncp - nc)))

    args = (cols1.astype(bf16), mask,
            params['w1m'].astype(bf16), params['b_conv1'],
            params['w2m'].astype(bf16), params['b_conv2'],
            params['w_dense1'].astype(bf16), params['b_dense1'],
            w_in_p.astype(bf16), b_ltc_p,
            w_out_p.astype(bf16), b_out_p)

    flops = 2 * (args[0].shape[0] * args[2].shape[0] * args[2].shape[1]
                 + dims['group'] * args[4].shape[0] * args[4].shape[1]
                 + B * args[6].shape[0] * args[6].shape[1]
                 + B * args[8].shape[0] * args[8].shape[1]
                 + B * args[10].shape[0] * args[10].shape[1])
    bytes_accessed = (sum(int(a.size) * a.dtype.itemsize for a in args)
                      + B * ncp * 4)

    kernel = functools.partial(_ltc_fused_kernel, batch=B, **dims)
    out = pl.pallas_call(
        kernel,
        out_shape=jax.ShapeDtypeStruct((B, ncp), jnp.float32),
        grid=(1,),
        in_specs=[_full_spec(a.shape) for a in args],
        out_specs=_full_spec((B, ncp)),
        compiler_params=pltpu.CompilerParams(
            dimension_semantics=("arbitrary",)),
        cost_estimate=pl.CostEstimate(flops=flops, transcendentals=B * UP,
                                      bytes_accessed=bytes_accessed),
    )(*args)
    return out[:, :nc]


# ----------------------------------------------------------------------------
# Pure-JAX f32 reference (documents the assumed semantics incl. full LTC step)
# ----------------------------------------------------------------------------
def reference_forward(params, x_nchw):
    x = jnp.transpose(x_nchw, (0, 2, 3, 1))

    def conv_relu(x, w_oihw, b):
        y = jax.lax.conv_general_dilated(
            x, jnp.transpose(w_oihw, (2, 3, 1, 0)), (1, 1), 'SAME',
            dimension_numbers=('NHWC', 'HWIO', 'NHWC'))
        return jnp.maximum(y + b.reshape(1, 1, 1, -1), 0.0)

    def pool2(x):
        return jax.lax.reduce_window(x, -jnp.inf, jax.lax.max,
                                     (1, 2, 2, 1), (1, 2, 2, 1), 'VALID')

    y = pool2(conv_relu(x, params['w_conv1'], params['b_conv1']))
    y = pool2(conv_relu(y, params['w_conv2'], params['b_conv2']))
    feat = y.reshape(y.shape[0], -1)
    h1 = jnp.maximum(feat @ params['w_dense1'] + params['b_dense1'], 0.0)
    h0 = jnp.zeros((feat.shape[0], params['w_rec'].shape[0]), jnp.float32)
    pre = h1 @ params['w_in'] + h0 @ params['w_rec'] + params['b_ltc']
    h = h0 + (-h0 / params['tau'] + jnp.tanh(pre))
    return h @ params['w_out'] + params['b_out']


# ----------------------------------------------------------------------------
if __name__ == "__main__":
    key = jax.random.PRNGKey(0)
    B, C, H, W = 2, 4, 16, 16
    units, num_classes = 32, 2

    pkey, xkey = jax.random.split(key)
    params = init_params(pkey, C, H, W, units, num_classes)
    x = jax.random.normal(xkey, (B, C, H, W), jnp.float32)

    out = jax.jit(ltc_model_forward)(params, x)
    out = jax.block_until_ready(out)
    assert out.shape == (B, num_classes)

    ref = jax.block_until_ready(reference_forward(params, x))
    # bf16 matmul inputs (f32 accumulation) vs. a pure-f32 reference.
    np.testing.assert_allclose(np.asarray(out), np.asarray(ref),
                               rtol=5e-2, atol=5e-2)

    print("KERNEL_OK")
</pallas_src>

<mosaic_0001>
module attributes {stable_mosaic.version = 11 : i64} {
  func.func @_ltc_fused_kernel(%arg0: i32, %arg1: memref<216x64xbf16, #tpu.memory_space<vmem>>, %arg2: memref<216x1xf32, #tpu.memory_space<vmem>>, %arg3: memref<64x128xbf16, #tpu.memory_space<vmem>>, %arg4: memref<1x32xf32, #tpu.memory_space<vmem>>, %arg5: memref<512x256xbf16, #tpu.memory_space<vmem>>, %arg6: memref<1x64xf32, #tpu.memory_space<vmem>>, %arg7: memref<1024x128xbf16, #tpu.memory_space<vmem>>, %arg8: memref<1x128xf32, #tpu.memory_space<vmem>>, %arg9: memref<128x128xbf16, #tpu.memory_space<vmem>>, %arg10: memref<1x128xf32, #tpu.memory_space<vmem>>, %arg11: memref<128x128xbf16, #tpu.memory_space<vmem>>, %arg12: memref<1x128xf32, #tpu.memory_space<vmem>>, %arg13: memref<2x128xf32, #tpu.memory_space<vmem>>) attributes {dimension_semantics = [#tpu.dimension_semantics<arbitrary>], iteration_bounds = array<i64: 1>, scalar_prefetch = 0 : i64, scratch_operands = 0 : i64, tpu.core_type = #tpu.core_type<tc>, window_params = [{pipeline_mode = #tpu.pipeline_mode<synchronous>, transform_indices = @transform_0, window_bounds = array<i64: 216, 64>}, {pipeline_mode = #tpu.pipeline_mode<synchronous>, transform_indices = @transform_1, window_bounds = array<i64: 216, 1>}, {pipeline_mode = #tpu.pipeline_mode<synchronous>, transform_indices = @transform_2, window_bounds = array<i64: 64, 128>}, {pipeline_mode = #tpu.pipeline_mode<synchronous>, transform_indices = @transform_3, window_bounds = array<i64: 1, 32>}, {pipeline_mode = #tpu.pipeline_mode<synchronous>, transform_indices = @transform_4, window_bounds = array<i64: 512, 256>}, {pipeline_mode = #tpu.pipeline_mode<synchronous>, transform_indices = @transform_5, window_bounds = array<i64: 1, 64>}, {pipeline_mode = #tpu.pipeline_mode<synchronous>, transform_indices = @transform_6, window_bounds = array<i64: 1024, 128>}, {pipeline_mode = #tpu.pipeline_mode<synchronous>, transform_indices = @transform_7, window_bounds = array<i64: 1, 128>}, {pipeline_mode = #tpu.pipeline_mode<synchronous>, transform_indices = @transform_8, window_bounds = array<i64: 128, 128>}, {pipeline_mode = #tpu.pipeline_mode<synchronous>, transform_indices = @transform_9, window_bounds = array<i64: 1, 128>}, {pipeline_mode = #tpu.pipeline_mode<synchronous>, transform_indices = @transform_10, window_bounds = array<i64: 128, 128>}, {pipeline_mode = #tpu.pipeline_mode<synchronous>, transform_indices = @transform_11, window_bounds = array<i64: 1, 128>}, {pipeline_mode = #tpu.pipeline_mode<synchronous>, transform_indices = @transform_12, window_bounds = array<i64: 2, 128>}]} {
    %c0 = arith.constant 0 : index
    %c0_0 = arith.constant 0 : index
    %0 = vector.load %arg1[%c0, %c0_0] : memref<216x64xbf16, #tpu.memory_space<vmem>>, vector<216x64xbf16>
    %c0_1 = arith.constant 0 : index
    %c0_2 = arith.constant 0 : index
    %1 = vector.load %arg3[%c0_1, %c0_2] : memref<64x128xbf16, #tpu.memory_space<vmem>>, vector<64x128xbf16>
    %cst = arith.constant dense<0.000000e+00> : vector<216x128xf32>
    %2 = tpu.matmul %0, %1, %cst {dimension_numbers = #tpu.dot_dimension_numbers<[1], [0], [0], [1], [0, 0, 1, 1], [], []>} : vector<216x64xbf16>, vector<64x128xbf16>, vector<216x128xf32> -> vector<216x128xf32>
    %c32_i32 = arith.constant 32 : i32
    %3 = tpu.dynamic_rotate %2 by %c32_i32 dim 1 : vector<216x128xf32>, i32 -> vector<216x128xf32>
    %4 = arith.maximumf %2, %3 : vector<216x128xf32>
    %c64_i32 = arith.constant 64 : i32
    %5 = tpu.dynamic_rotate %4 by %c64_i32 dim 1 : vector<216x128xf32>, i32 -> vector<216x128xf32>
    %6 = arith.maximumf %4, %5 : vector<216x128xf32>
    %7 = vector.extract_strided_slice %6 {offsets = [0, 0], sizes = [216, 32], strides = [1, 1]} : vector<216x128xf32> to vector<216x32xf32>
    %c0_3 = arith.constant 0 : index
    %c0_4 = arith.constant 0 : index
    %8 = vector.load %arg4[%c0_3, %c0_4] : memref<1x32xf32, #tpu.memory_space<vmem>>, vector<1x32xf32>
    %9 = vector.broadcast %8 : vector<1x32xf32> to vector<216x32xf32>
    %10 = arith.addf %7, %9 : vector<216x32xf32>
    %cst_5 = arith.constant 0.000000e+00 : f32
    %11 = vector.broadcast %cst_5 : f32 to vector<216x32xf32>
    %12 = arith.maximumf %10, %11 : vector<216x32xf32>
    %c0_6 = arith.constant 0 : index
    %c0_7 = arith.constant 0 : index
    %13 = vector.load %arg2[%c0_6, %c0_7] : memref<216x1xf32, #tpu.memory_space<vmem>>, vector<216x1xf32>
    %14 = vector.broadcast %13 : vector<216x1xf32> to vector<216x32xf32>
    %15 = arith.mulf %12, %14 : vector<216x32xf32>
    %16 = arith.truncf %15 : vector<216x32xf32> to vector<216x32xbf16>
    %17 = vector.extract_strided_slice %16 {offsets = [0, 0], sizes = [50, 32], strides = [1, 1]} : vector<216x32xbf16> to vector<50x32xbf16>
    %18 = vector.extract_strided_slice %16 {offsets = [50, 0], sizes = [50, 32], strides = [1, 1]} : vector<216x32xbf16> to vector<50x32xbf16>
    %19 = vector.extract_strided_slice %16 {offsets = [2, 0], sizes = [50, 32], strides = [1, 1]} : vector<216x32xbf16> to vector<50x32xbf16>
    %20 = vector.extract_strided_slice %16 {offsets = [52, 0], sizes = [50, 32], strides = [1, 1]} : vector<216x32xbf16> to vector<50x32xbf16>
    %21 = vector.extract_strided_slice %16 {offsets = [100, 0], sizes = [50, 32], strides = [1, 1]} : vector<216x32xbf16> to vector<50x32xbf16>
    %22 = vector.extract_strided_slice %16 {offsets = [150, 0], sizes = [50, 32], strides = [1, 1]} : vector<216x32xbf16> to vector<50x32xbf16>
    %23 = vector.extract_strided_slice %16 {offsets = [102, 0], sizes = [50, 32], strides = [1, 1]} : vector<216x32xbf16> to vector<50x32xbf16>
    %24 = vector.extract_strided_slice %16 {offsets = [152, 0], sizes = [50, 32], strides = [1, 1]} : vector<216x32xbf16> to vector<50x32xbf16>
    %25 = vector.extract_strided_slice %16 {offsets = [10, 0], sizes = [50, 32], strides = [1, 1]} : vector<216x32xbf16> to vector<50x32xbf16>
    %26 = vector.extract_strided_slice %16 {offsets = [60, 0], sizes = [50, 32], strides = [1, 1]} : vector<216x32xbf16> to vector<50x32xbf16>
    %27 = vector.extract_strided_slice %16 {offsets = [12, 0], sizes = [50, 32], strides = [1, 1]} : vector<216x32xbf16> to vector<50x32xbf16>
    %28 = vector.extract_strided_slice %16 {offsets = [62, 0], sizes = [50, 32], strides = [1, 1]} : vector<216x32xbf16> to vector<50x32xbf16>
    %29 = vector.extract_strided_slice %16 {offsets = [110, 0], sizes = [50, 32], strides = [1, 1]} : vector<216x32xbf16> to vector<50x32xbf16>
    %30 = vector.extract_strided_slice %16 {offsets = [160, 0], sizes = [50, 32], strides = [1, 1]} : vector<216x32xbf16> to vector<50x32xbf16>
    %31 = vector.extract_strided_slice %16 {offsets = [112, 0], sizes = [50, 32], strides = [1, 1]} : vector<216x32xbf16> to vector<50x32xbf16>
    %32 = vector.extract_strided_slice %16 {offsets = [162, 0], sizes = [50, 32], strides = [1, 1]} : vector<216x32xbf16> to vector<50x32xbf16>
    %33 = tpu.concatenate %17, %18, %19, %20, %21, %22, %23, %24, %25, %26, %27, %28, %29, %30, %31, %32 in 1 : vector<50x32xbf16>, vector<50x32xbf16>, vector<50x32xbf16>, vector<50x32xbf16>, vector<50x32xbf16>, vector<50x32xbf16>, vector<50x32xbf16>, vector<50x32xbf16>, vector<50x32xbf16>, vector<50x32xbf16>, vector<50x32xbf16>, vector<50x32xbf16>, vector<50x32xbf16>, vector<50x32xbf16>, vector<50x32xbf16>, vector<50x32xbf16> -> vector<50x512xbf16>
    %c0_8 = arith.constant 0 : index
    %c0_9 = arith.constant 0 : index
    %34 = vector.load %arg5[%c0_8, %c0_9] : memref<512x256xbf16, #tpu.memory_space<vmem>>, vector<512x256xbf16>
    %cst_10 = arith.constant dense<0.000000e+00> : vector<50x256xf32>
    %35 = tpu.matmul %33, %34, %cst_10 {dimension_numbers = #tpu.dot_dimension_numbers<[1], [0], [0], [1], [0, 0, 1, 1], [], []>} : vector<50x512xbf16>, vector<512x256xbf16>, vector<50x256xf32> -> vector<50x256xf32>
    %c64_i32_11 = arith.constant 64 : i32
    %36 = tpu.dynamic_rotate %35 by %c64_i32_11 dim 1 : vector<50x256xf32>, i32 -> vector<50x256xf32>
    %37 = arith.maximumf %35, %36 : vector<50x256xf32>
    %c128_i32 = arith.constant 128 : i32
    %38 = tpu.dynamic_rotate %37 by %c128_i32 dim 1 : vector<50x256xf32>, i32 -> vector<50x256xf32>
    %39 = arith.maximumf %37, %38 : vector<50x256xf32>
    %40 = vector.extract_strided_slice %39 {offsets = [0, 0], sizes = [50, 64], strides = [1, 1]} : vector<50x256xf32> to vector<50x64xf32>
    %c0_12 = arith.constant 0 : index
    %c0_13 = arith.constant 0 : index
    %41 = vector.load %arg6[%c0_12, %c0_13] : memref<1x64xf32, #tpu.memory_space<vmem>>, vector<1x64xf32>
    %42 = vector.broadcast %41 : vector<1x64xf32> to vector<50x64xf32>
    %43 = arith.addf %40, %42 : vector<50x64xf32>
    %cst_14 = arith.constant 0.000000e+00 : f32
    %44 = vector.broadcast %cst_14 : f32 to vector<50x64xf32>
    %45 = arith.maximumf %43, %44 : vector<50x64xf32>
    %46 = arith.truncf %45 : vector<50x64xf32> to vector<50x64xbf16>
    %47 = vector.extract_strided_slice %46 {offsets = [0, 0], sizes = [2, 64], strides = [1, 1]} : vector<50x64xbf16> to vector<2x64xbf16>
    %48 = vector.extract_strided_slice %46 {offsets = [2, 0], sizes = [2, 64], strides = [1, 1]} : vector<50x64xbf16> to vector<2x64xbf16>
    %49 = vector.extract_strided_slice %46 {offsets = [4, 0], sizes = [2, 64], strides = [1, 1]} : vector<50x64xbf16> to vector<2x64xbf16>
    %50 = vector.extract_strided_slice %46 {offsets = [6, 0], sizes = [2, 64], strides = [1, 1]} : vector<50x64xbf16> to vector<2x64xbf16>
    %51 = vector.extract_strided_slice %46 {offsets = [10, 0], sizes = [2, 64], strides = [1, 1]} : vector<50x64xbf16> to vector<2x64xbf16>
    %52 = vector.extract_strided_slice %46 {offsets = [12, 0], sizes = [2, 64], strides = [1, 1]} : vector<50x64xbf16> to vector<2x64xbf16>
    %53 = vector.extract_strided_slice %46 {offsets = [14, 0], sizes = [2, 64], strides = [1, 1]} : vector<50x64xbf16> to vector<2x64xbf16>
    %54 = vector.extract_strided_slice %46 {offsets = [16, 0], sizes = [2, 64], strides = [1, 1]} : vector<50x64xbf16> to vector<2x64xbf16>
    %55 = vector.extract_strided_slice %46 {offsets = [20, 0], sizes = [2, 64], strides = [1, 1]} : vector<50x64xbf16> to vector<2x64xbf16>
    %56 = vector.extract_strided_slice %46 {offsets = [22, 0], sizes = [2, 64], strides = [1, 1]} : vector<50x64xbf16> to vector<2x64xbf16>
    %57 = vector.extract_strided_slice %46 {offsets = [24, 0], sizes = [2, 64], strides = [1, 1]} : vector<50x64xbf16> to vector<2x64xbf16>
    %58 = vector.extract_strided_slice %46 {offsets = [26, 0], sizes = [2, 64], strides = [1, 1]} : vector<50x64xbf16> to vector<2x64xbf16>
    %59 = vector.extract_strided_slice %46 {offsets = [30, 0], sizes = [2, 64], strides = [1, 1]} : vector<50x64xbf16> to vector<2x64xbf16>
    %60 = vector.extract_strided_slice %46 {offsets = [32, 0], sizes = [2, 64], strides = [1, 1]} : vector<50x64xbf16> to vector<2x64xbf16>
    %61 = vector.extract_strided_slice %46 {offsets = [34, 0], sizes = [2, 64], strides = [1, 1]} : vector<50x64xbf16> to vector<2x64xbf16>
    %62 = vector.extract_strided_slice %46 {offsets = [36, 0], sizes = [2, 64], strides = [1, 1]} : vector<50x64xbf16> to vector<2x64xbf16>
    %63 = tpu.concatenate %47, %48, %49, %50, %51, %52, %53, %54, %55, %56, %57, %58, %59, %60, %61, %62 in 1 : vector<2x64xbf16>, vector<2x64xbf16>, vector<2x64xbf16>, vector<2x64xbf16>, vector<2x64xbf16>, vector<2x64xbf16>, vector<2x64xbf16>, vector<2x64xbf16>, vector<2x64xbf16>, vector<2x64xbf16>, vector<2x64xbf16>, vector<2x64xbf16>, vector<2x64xbf16>, vector<2x64xbf16>, vector<2x64xbf16>, vector<2x64xbf16> -> vector<2x1024xbf16>
    %c0_15 = arith.constant 0 : index
    %c0_16 = arith.constant 0 : index
    %64 = vector.load %arg7[%c0_15, %c0_16] : memref<1024x128xbf16, #tpu.memory_space<vmem>>, vector<1024x128xbf16>
    %cst_17 = arith.constant dense<0.000000e+00> : vector<2x128xf32>
    %65 = tpu.matmul %63, %64, %cst_17 {dimension_numbers = #tpu.dot_dimension_numbers<[1], [0], [0], [1], [0, 0, 1, 1], [], []>} : vector<2x1024xbf16>, vector<1024x128xbf16>, vector<2x128xf32> -> vector<2x128xf32>
    %c0_18 = arith.constant 0 : index
    %c0_19 = arith.constant 0 : index
    %66 = vector.load %arg8[%c0_18, %c0_19] : memref<1x128xf32, #tpu.memory_space<vmem>>, vector<1x128xf32>
    %67 = vector.broadcast %66 : vector<1x128xf32> to vector<2x128xf32>
    %68 = arith.addf %65, %67 : vector<2x128xf32>
    %cst_20 = arith.constant 0.000000e+00 : f32
    %69 = vector.broadcast %cst_20 : f32 to vector<2x128xf32>
    %70 = arith.maximumf %68, %69 : vector<2x128xf32>
    %71 = arith.truncf %70 : vector<2x128xf32> to vector<2x128xbf16>
    %c0_21 = arith.constant 0 : index
    %c0_22 = arith.constant 0 : index
    %72 = vector.load %arg9[%c0_21, %c0_22] : memref<128x128xbf16, #tpu.memory_space<vmem>>, vector<128x128xbf16>
    %cst_23 = arith.constant dense<0.000000e+00> : vector<2x128xf32>
    %73 = tpu.matmul %71, %72, %cst_23 {dimension_numbers = #tpu.dot_dimension_numbers<[1], [0], [0], [1], [0, 0, 1, 1], [], []>} : vector<2x128xbf16>, vector<128x128xbf16>, vector<2x128xf32> -> vector<2x128xf32>
    %c0_24 = arith.constant 0 : index
    %c0_25 = arith.constant 0 : index
    %74 = vector.load %arg10[%c0_24, %c0_25] : memref<1x128xf32, #tpu.memory_space<vmem>>, vector<1x128xf32>
    %75 = vector.broadcast %74 : vector<1x128xf32> to vector<2x128xf32>
    %76 = arith.addf %73, %75 : vector<2x128xf32>
    %77 = math.tanh %76 : vector<2x128xf32>
    %78 = arith.truncf %77 : vector<2x128xf32> to vector<2x128xbf16>
    %c0_26 = arith.constant 0 : index
    %c0_27 = arith.constant 0 : index
    %79 = vector.load %arg11[%c0_26, %c0_27] : memref<128x128xbf16, #tpu.memory_space<vmem>>, vector<128x128xbf16>
    %cst_28 = arith.constant dense<0.000000e+00> : vector<2x128xf32>
    %80 = tpu.matmul %78, %79, %cst_28 {dimension_numbers = #tpu.dot_dimension_numbers<[1], [0], [0], [1], [0, 0, 1, 1], [], []>} : vector<2x128xbf16>, vector<128x128xbf16>, vector<2x128xf32> -> vector<2x128xf32>
    %c0_29 = arith.constant 0 : index
    %c0_30 = arith.constant 0 : index
    %81 = vector.load %arg12[%c0_29, %c0_30] : memref<1x128xf32, #tpu.memory_space<vmem>>, vector<1x128xf32>
    %82 = vector.broadcast %81 : vector<1x128xf32> to vector<2x128xf32>
    %83 = arith.addf %80, %82 : vector<2x128xf32>
    %c0_31 = arith.constant 0 : index
    %c0_32 = arith.constant 0 : index
    %84 = vector.load %arg13[%c0_31, %c0_32] : memref<2x128xf32, #tpu.memory_space<vmem>>, vector<2x128xf32>
    tpu.vector_store %arg13[%c0_31, %c0_32], %83 {strides = array<i32>} : memref<2x128xf32, #tpu.memory_space<vmem>>, vector<2x128xf32>,
    return
  }
  func.func @transform_0(%arg0: i32) -> (i32, i32) {
    %c0_i32 = arith.constant 0 : i32
    %c0_i32_0 = arith.constant 0 : i32
    %c0_i32_1 = arith.constant 0 : i32
    return %c0_i32, %c0_i32_0 : i32, i32
  }
  func.func @transform_1(%arg0: i32) -> (i32, i32) {
    %c0_i32 = arith.constant 0 : i32
    %c0_i32_0 = arith.constant 0 : i32
    %c0_i32_1 = arith.constant 0 : i32
    return %c0_i32, %c0_i32_0 : i32, i32
  }
  func.func @transform_2(%arg0: i32) -> (i32, i32) {
    %c0_i32 = arith.constant 0 : i32
    %c0_i32_0 = arith.constant 0 : i32
    %c0_i32_1 = arith.constant 0 : i32
    return %c0_i32, %c0_i32_0 : i32, i32
  }
  func.func @transform_3(%arg0: i32) -> (i32, i32) {
    %c0_i32 = arith.constant 0 : i32
    %c0_i32_0 = arith.constant 0 : i32
    %c0_i32_1 = arith.constant 0 : i32
    return %c0_i32, %c0_i32_0 : i32, i32
  }
  func.func @transform_4(%arg0: i32) -> (i32, i32) {
    %c0_i32 = arith.constant 0 : i32
    %c0_i32_0 = arith.constant 0 : i32
    %c0_i32_1 = arith.constant 0 : i32
    return %c0_i32, %c0_i32_0 : i32, i32
  }
  func.func @transform_5(%arg0: i32) -> (i32, i32) {
    %c0_i32 = arith.constant 0 : i32
    %c0_i32_0 = arith.constant 0 : i32
    %c0_i32_1 = arith.constant 0 : i32
    return %c0_i32, %c0_i32_0 : i32, i32
  }
  func.func @transform_6(%arg0: i32) -> (i32, i32) {
    %c0_i32 = arith.constant 0 : i32
    %c0_i32_0 = arith.constant 0 : i32
    %c0_i32_1 = arith.constant 0 : i32
    return %c0_i32, %c0_i32_0 : i32, i32
  }
  func.func @transform_7(%arg0: i32) -> (i32, i32) {
    %c0_i32 = arith.constant 0 : i32
    %c0_i32_0 = arith.constant 0 : i32
    %c0_i32_1 = arith.constant 0 : i32
    return %c0_i32, %c0_i32_0 : i32, i32
  }
  func.func @transform_8(%arg0: i32) -> (i32, i32) {
    %c0_i32 = arith.constant 0 : i32
    %c0_i32_0 = arith.constant 0 : i32
    %c0_i32_1 = arith.constant 0 : i32
    return %c0_i32, %c0_i32_0 : i32, i32
  }
  func.func @transform_9(%arg0: i32) -> (i32, i32) {
    %c0_i32 = arith.constant 0 : i32
    %c0_i32_0 = arith.constant 0 : i32
    %c0_i32_1 = arith.constant 0 : i32
    return %c0_i32, %c0_i32_0 : i32, i32
  }
  func.func @transform_10(%arg0: i32) -> (i32, i32) {
    %c0_i32 = arith.constant 0 : i32
    %c0_i32_0 = arith.constant 0 : i32
    %c0_i32_1 = arith.constant 0 : i32
    return %c0_i32, %c0_i32_0 : i32, i32
  }
  func.func @transform_11(%arg0: i32) -> (i32, i32) {
    %c0_i32 = arith.constant 0 : i32
    %c0_i32_0 = arith.constant 0 : i32
    %c0_i32_1 = arith.constant 0 : i32
    return %c0_i32, %c0_i32_0 : i32, i32
  }
  func.func @transform_12(%arg0: i32) -> (i32, i32) {
    %c0_i32 = arith.constant 0 : i32
    %c0_i32_0 = arith.constant 0 : i32
    %c0_i32_1 = arith.constant 0 : i32
    return %c0_i32, %c0_i32_0 : i32, i32
  }
}

</mosaic_0001>

<llo_original>
// kernel: ltc_model_forward.1
$region0: #{ltc_model_forward.1}
  #allocation0 [shape = 'u32[]', space=smem, size = 0x4, offset = 0x4, fixed_abs, tag = 'smem constant byte address 0x4 - core index']
  #allocation1 [shape = 'u32[72,128]{1,0:T(1,128)}', space=vmem, size = 0x9000, scoped, tag = 'internal scratch']
  %s0 = inlined_call_operand.vmem [shape: bf16[216,64], index: 0, kind: input, shape index: {}]
  %s1 = inlined_call_operand.vmem [shape: f32[216,1], index: 1, kind: input, shape index: {}]
  %s2 = inlined_call_operand.vmem [shape: bf16[64,128], index: 2, kind: input, shape index: {}]
  %s3 = inlined_call_operand.vmem [shape: f32[1,32], index: 3, kind: input, shape index: {}]
  %s4 = inlined_call_operand.vmem [shape: bf16[512,256], index: 4, kind: input, shape index: {}]
  %s5 = inlined_call_operand.vmem [shape: f32[1,64], index: 5, kind: input, shape index: {}]
  %s6 = inlined_call_operand.vmem [shape: bf16[1024,128], index: 6, kind: input, shape index: {}]
  %s7 = inlined_call_operand.vmem [shape: f32[1,128], index: 7, kind: input, shape index: {}]
  %s8 = inlined_call_operand.vmem [shape: bf16[128,128], index: 8, kind: input, shape index: {}]
  %s9 = inlined_call_operand.vmem [shape: f32[1,128], index: 9, kind: input, shape index: {}]
  %s10 = inlined_call_operand.vmem [shape: bf16[128,128], index: 10, kind: input, shape index: {}]
  %s11 = inlined_call_operand.vmem [shape: f32[1,128], index: 11, kind: input, shape index: {}]
  %s12 = inlined_call_operand.hbm [shape: f32[2,128], index: 12, kind: output, shape index: {}]
  %s13 = sld [smem:[#allocation0]]
  $region58: #{ltc_model_forward.1} parent=0
    _
  %s15 = ssub.s32 1, %s13
  %s16 = scalar_select 0, %s15, %s13
  $region1: #{ltc_model_forward.1} parent=0
    #allocation2 [shape = 'u8[1024]{0}', space=vmem, size = 0x400, scoped, tag = 'output window, operand 0, single buffered']
    #allocation3 [shape = 's32[1]{0}', space=sflag, size = 0x4, scoped, tag = 'scoped memory for ltc_model_forward.1']
    %17 = vsyncpa [#allocation3], 0
    // Predicated region
    $region2: #{ltc_model_forward.1} parent=1 // pred_check
      _
    $region3: #{ltc_model_forward.1} parent=1 // pred_check_branch
      %19 = sbr.rel (0) target = $region5
    $region4: #{ltc_model_forward.1} parent=1 // pred_region
      _
    $region5: #{ltc_model_forward.1} parent=1 // pred_fallthru
      _
    // Predicated region
    $region6: #{ltc_model_forward.1} parent=1 // pred_check
      _
    $region7: #{ltc_model_forward.1} parent=1 // pred_check_branch
      %21 = sbr.rel (0) target = $region9
    $region8: #{ltc_model_forward.1} parent=1 // pred_region
      _
    $region9: #{ltc_model_forward.1} parent=1 // pred_fallthru
      _
    // Predicated region
    $region10: #{ltc_model_forward.1} parent=1 // pred_check
      _
    $region11: #{ltc_model_forward.1} parent=1 // pred_check_branch
      %23 = sbr.rel (0) target = $region13
    $region12: #{ltc_model_forward.1} parent=1 // pred_region
      _
    $region13: #{ltc_model_forward.1} parent=1 // pred_fallthru
      _
    // Predicated region
    $region14: #{ltc_model_forward.1} parent=1 // pred_check
      _
    $region15: #{ltc_model_forward.1} parent=1 // pred_check_branch
      %25 = sbr.rel (0) target = $region17
    $region16: #{ltc_model_forward.1} parent=1 // pred_region
      _
    $region17: #{ltc_model_forward.1} parent=1 // pred_fallthru
      _
    // Predicated region
    $region18: #{ltc_model_forward.1} parent=1 // pred_check
      _
    $region19: #{ltc_model_forward.1} parent=1 // pred_check_branch
      %27 = sbr.rel (0) target = $region21
    $region20: #{ltc_model_forward.1} parent=1 // pred_region
      _
    $region21: #{ltc_model_forward.1} parent=1 // pred_fallthru
      _
    // Predicated region
    $region22: #{ltc_model_forward.1} parent=1 // pred_check
      _
    $region23: #{ltc_model_forward.1} parent=1 // pred_check_branch
      %29 = sbr.rel (0) target = $region25
    $region24: #{ltc_model_forward.1} parent=1 // pred_region
      _
    $region25: #{ltc_model_forward.1} parent=1 // pred_fallthru
      _
    // Predicated region
    $region26: #{ltc_model_forward.1} parent=1 // pred_check
      _
    $region27: #{ltc_model_forward.1} parent=1 // pred_check_branch
      %31 = sbr.rel (0) target = $region29
    $region28: #{ltc_model_forward.1} parent=1 // pred_region
      _
    $region29: #{ltc_model_forward.1} parent=1 // pred_fallthru
      _
    // Predicated region
    $region30: #{ltc_model_forward.1} parent=1 // pred_check
      _
    $region31: #{ltc_model_forward.1} parent=1 // pred_check_branch
      %33 = sbr.rel (0) target = $region33
    $region32: #{ltc_model_forward.1} parent=1 // pred_region
      _
    $region33: #{ltc_model_forward.1} parent=1 // pred_fallthru
      _
    // Predicated region
    $region34: #{ltc_model_forward.1} parent=1 // pred_check
      _
    $region35: #{ltc_model_forward.1} parent=1 // pred_check_branch
      %35 = sbr.rel (0) target = $region37
    $region36: #{ltc_model_forward.1} parent=1 // pred_region
      _
    $region37: #{ltc_model_forward.1} parent=1 // pred_fallthru
      _
    // Predicated region
    $region38: #{ltc_model_forward.1} parent=1 // pred_check
      _
    $region39: #{ltc_model_forward.1} parent=1 // pred_check_branch
      %37 = sbr.rel (0) target = $region41
    $region40: #{ltc_model_forward.1} parent=1 // pred_region
      _
    $region41: #{ltc_model_forward.1} parent=1 // pred_fallthru
      _
    // Predicated region
    $region42: #{ltc_model_forward.1} parent=1 // pred_check
      _
    $region43: #{ltc_model_forward.1} parent=1 // pred_check_branch
      %39 = sbr.rel (0) target = $region45
    $region44: #{ltc_model_forward.1} parent=1 // pred_region
      _
    $region45: #{ltc_model_forward.1} parent=1 // pred_fallthru
      _
    // Predicated region
    $region46: #{ltc_model_forward.1} parent=1 // pred_check
      _
    $region47: #{ltc_model_forward.1} parent=1 // pred_check_branch
      %41 = sbr.rel (0) target = $region49
    $region48: #{ltc_model_forward.1} parent=1 // pred_region
      _
    $region49: #{ltc_model_forward.1} parent=1 // pred_fallthru
      _
    %v43 = vld [vmem:[%s0] sm:$0xf]
    %v44 = vld [vmem:[%s0 + $0x4] sm:$0xf]
    %v45 = vld [vmem:[%s0 + $0x8] sm:$0xf]
    %v46 = vld [vmem:[%s0 + $0xc] sm:$0xf]
    %v47 = vld [vmem:[%s0 + $0x10] sm:$0xf]
    %v48 = vld [vmem:[%s0 + $0x14] sm:$0xf]
    %v49 = vld [vmem:[%s0 + $0x18] sm:$0xf]
    %v50 = vld [vmem:[%s0 + $0x1c] sm:$0xf]
    %v51 = vld [vmem:[%s0 + $0x20] sm:$0xf]
    %v52 = vld [vmem:[%s0 + $0x24] sm:$0xf]
    %v53 = vld [vmem:[%s0 + $0x28] sm:$0xf]
    %v54 = vld [vmem:[%s0 + $0x2c] sm:$0xf]
    %v55 = vld [vmem:[%s0 + $0x30] sm:$0xf]
    %v56 = vld [vmem:[%s0 + $0x34] sm:$0xf]
    %v57 = vld [vmem:[%s0 + $0x38] sm:$0xf]
    %v58 = vld [vmem:[%s0 + $0x3c] sm:$0xf]
    %v59 = vld [vmem:[%s0 + $0x40] sm:$0xf]
    %v60 = vld [vmem:[%s0 + $0x44] sm:$0xf]
    %v61 = vld [vmem:[%s0 + $0x48] sm:$0xf]
    %v62 = vld [vmem:[%s0 + $0x4c] sm:$0xf]
    %v63 = vld [vmem:[%s0 + $0x50] sm:$0xf]
    %v64 = vld [vmem:[%s0 + $0x54] sm:$0xf]
    %v65 = vld [vmem:[%s0 + $0x58] sm:$0xf]
    %v66 = vld [vmem:[%s0 + $0x5c] sm:$0xf]
    %v67 = vld [vmem:[%s0 + $0x60] sm:$0xf]
    %v68 = vld [vmem:[%s0 + $0x64] sm:$0xf]
    %v69 = vld [vmem:[%s0 + $0x68] sm:$0xf]
    %v70 = vld [vmem:[%s2] sm:$0xf]
    %v71 = vld [vmem:[%s2 + $0x4] sm:$0xf]
    %v72 = vld [vmem:[%s2 + $0x8] sm:$0xf]
    %v73 = vld [vmem:[%s2 + $0xc] sm:$0xf]
    %v74 = vld [vmem:[%s2 + $0x10] sm:$0xf]
    %v75 = vld [vmem:[%s2 + $0x14] sm:$0xf]
    %v76 = vld [vmem:[%s2 + $0x18] sm:$0xf]
    %v77 = vld [vmem:[%s2 + $0x1c] sm:$0xf]
    %v105 = vunpack.c.l.b16 %v43
    %v106 = vunpack.c.l.b16 %v44
    %v107 = vunpack.c.l.b16 %v45
    %v108 = vunpack.c.l.b16 %v46
    %v109 = vunpack.c.l.b16 %v47
    %v110 = vunpack.c.l.b16 %v48
    %v111 = vunpack.c.l.b16 %v49
    %v112 = vunpack.c.l.b16 %v50
    %v113 = vunpack.c.l.b16 %v51
    %v114 = vunpack.c.l.b16 %v52
    %v115 = vunpack.c.l.b16 %v53
    %v116 = vunpack.c.l.b16 %v54
    %v117 = vunpack.c.l.b16 %v55
    %v118 = vunpack.c.l.b16 %v56
    %v119 = vunpack.c.l.b16 %v57
    %v120 = vunpack.c.l.b16 %v58
    %v121 = vunpack.c.l.b16 %v59
    %v122 = vunpack.c.l.b16 %v60
    %v123 = vunpack.c.l.b16 %v61
    %v124 = vunpack.c.l.b16 %v62
    %v125 = vunpack.c.l.b16 %v63
    %v126 = vunpack.c.l.b16 %v64
    %v127 = vunpack.c.l.b16 %v65
    %v128 = vunpack.c.l.b16 %v66
    %v129 = vunpack.c.l.b16 %v67
    %v130 = vunpack.c.l.b16 %v68
    %v131 = vunpack.c.l.b16 %v69
    %v132 = vpack.c.b16 %v106, %v105
    %v133 = vpack.c.b16 %v108, %v107
    %v134 = vpack.c.b16 %v110, %v109
    %v135 = vpack.c.b16 %v112, %v111
    %v136 = vpack.c.b16 %v114, %v113
    %v137 = vpack.c.b16 %v116, %v115
    %v138 = vpack.c.b16 %v118, %v117
    %v139 = vpack.c.b16 %v120, %v119
    %v140 = vpack.c.b16 %v122, %v121
    %v141 = vpack.c.b16 %v124, %v123
    %v142 = vpack.c.b16 %v126, %v125
    %v143 = vpack.c.b16 %v128, %v127
    %v144 = vpack.c.b16 %v130, %v129
    %v145 = vpack.c.b16 %v131, %v131
    %v154 = vunpack.c.l.b16 %v70
    %v155 = vunpack.c.l.b16 %v71
    %v156 = vunpack.c.l.b16 %v72
    %v157 = vunpack.c.l.b16 %v73
    %v158 = vunpack.c.l.b16 %v74
    %v159 = vunpack.c.l.b16 %v75
    %v160 = vunpack.c.l.b16 %v76
    %v161 = vunpack.c.l.b16 %v77
    %v162 = vpack.c.b16 %v155, %v154
    %v163 = vpack.c.b16 %v157, %v156
    %v164 = vpack.c.b16 %v159, %v158
    %v165 = vpack.c.b16 %v161, %v160
    %vm170 = vcmask 523264
    %v172 = vsel %vm170, %v132, 0
    %v175 = vsel %vm170, %v133, 0
    %v178 = vsel %vm170, %v134, 0
    %v181 = vsel %vm170, %v135, 0
    %v184 = vsel %vm170, %v136, 0
    %v187 = vsel %vm170, %v137, 0
    %v190 = vsel %vm170, %v138, 0
    %v193 = vsel %vm170, %v139, 0
    %v196 = vsel %vm170, %v140, 0
    %v199 = vsel %vm170, %v141, 0
    %v202 = vsel %vm170, %v142, 0
    %v205 = vsel %vm170, %v143, 0
    %v208 = vsel %vm170, %v144, 0
    %v211 = vsel %vm170, %v145, 0
    %213 = vmatpush.bf16.msra.mxu0 0
    %214 = vmatpush.bf16.msra.mxu0 0
    %215 = vmatpush.bf16.msra.mxu0 0
    %216 = vmatpush.bf16.msra.mxu0 0
    %217 = vmatpush.bf16.msra.mxu0 %v165
    %218 = vmatpush.bf16.msra.mxu0 %v164
    %219 = vmatpush.bf16.msra.mxu0 %v163
    %220 = vmatpush.bf16.msra.mxu0 %v162
    %221 = vmatmul.bf16.gmra.mxu0 %v172
    %v222 = vpop.f32.mrf.mxu0
    %v223 = vadd.f32 0.0, %v222
    %v224 = vpop.f32.mrf.mxu0
    %v225 = vadd.f32 0.0, %v224
    %226 = vmatmul.bf16.gmra.mxu0 %v175
    %v227 = vpop.f32.mrf.mxu0
    %v228 = vadd.f32 0.0, %v227
    %v229 = vpop.f32.mrf.mxu0
    %v230 = vadd.f32 0.0, %v229
    %231 = vmatmul.bf16.gmra.mxu0 %v178
    %v232 = vpop.f32.mrf.mxu0
    %v233 = vadd.f32 0.0, %v232
    %v234 = vpop.f32.mrf.mxu0
    %v235 = vadd.f32 0.0, %v234
    %236 = vmatmul.bf16.gmra.mxu0 %v181
    %v237 = vpop.f32.mrf.mxu0
    %v238 = vadd.f32 0.0, %v237
    %v239 = vpop.f32.mrf.mxu0
    %v240 = vadd.f32 0.0, %v239
    %241 = vmatmul.bf16.gmra.mxu0 %v184
    %v242 = vpop.f32.mrf.mxu0
    %v243 = vadd.f32 0.0, %v242
    %v244 = vpop.f32.mrf.mxu0
    %v245 = vadd.f32 0.0, %v244
    %246 = vmatmul.bf16.gmra.mxu0 %v187
    %v247 = vpop.f32.mrf.mxu0
    %v248 = vadd.f32 0.0, %v247
    %v249 = vpop.f32.mrf.mxu0
    %v250 = vadd.f32 0.0, %v249
    %251 = vmatmul.bf16.gmra.mxu0 %v190
    %v252 = vpop.f32.mrf.mxu0
    %v253 = vadd.f32 0.0, %v252
    %v254 = vpop.f32.mrf.mxu0
    %v255 = vadd.f32 0.0, %v254
    %256 = vmatmul.bf16.gmra.mxu0 %v193
    %v257 = vpop.f32.mrf.mxu0
    %v258 = vadd.f32 0.0, %v257
    %v259 = vpop.f32.mrf.mxu0
    %v260 = vadd.f32 0.0, %v259
    %261 = vmatmul.bf16.gmra.mxu0 %v196
    %v262 = vpop.f32.mrf.mxu0
    %v263 = vadd.f32 0.0, %v262
    %v264 = vpop.f32.mrf.mxu0
    %v265 = vadd.f32 0.0, %v264
    %266 = vmatmul.bf16.gmra.mxu0 %v199
    %v267 = vpop.f32.mrf.mxu0
    %v268 = vadd.f32 0.0, %v267
    %v269 = vpop.f32.mrf.mxu0
    %v270 = vadd.f32 0.0, %v269
    %271 = vmatmul.bf16.gmra.mxu0 %v202
    %v272 = vpop.f32.mrf.mxu0
    %v273 = vadd.f32 0.0, %v272
    %v274 = vpop.f32.mrf.mxu0
    %v275 = vadd.f32 0.0, %v274
    %276 = vmatmul.bf16.gmra.mxu0 %v205
    %v277 = vpop.f32.mrf.mxu0
    %v278 = vadd.f32 0.0, %v277
    %v279 = vpop.f32.mrf.mxu0
    %v280 = vadd.f32 0.0, %v279
    %281 = vmatmul.bf16.gmra.mxu0 %v208
    %v282 = vpop.f32.mrf.mxu0
    %v283 = vadd.f32 0.0, %v282
    %v284 = vpop.f32.mrf.mxu0
    %v285 = vadd.f32 0.0, %v284
    %286 = vmatmul.bf16.gmra.mxu0 %v211
    %v287 = vpop.f32.mrf.mxu0
    %v288 = vadd.f32 0.0, %v287
    %v289 = vpop.f32.mrf.mxu0
    %290 = vdwg.mxu0
    %291 = vrot.lane.b32.xlu0 %v223, 32
    %v292 = vpop.permute.xlu0 %291
    %293 = vrot.lane.b32.xlu0 %v225, 32
    %v294 = vpop.permute.xlu0 %293
    %295 = vrot.lane.b32.xlu0 %v228, 32
    %v296 = vpop.permute.xlu0 %295
    %297 = vrot.lane.b32.xlu0 %v230, 32
    %v298 = vpop.permute.xlu0 %297
    %299 = vrot.lane.b32.xlu0 %v233, 32
    %v300 = vpop.permute.xlu0 %299
    %301 = vrot.lane.b32.xlu0 %v235, 32
    %v302 = vpop.permute.xlu0 %301
    %303 = vrot.lane.b32.xlu0 %v238, 32
    %v304 = vpop.permute.xlu0 %303
    %305 = vrot.lane.b32.xlu0 %v240, 32
    %v306 = vpop.permute.xlu0 %305
    %307 = vrot.lane.b32.xlu0 %v243, 32
    %v308 = vpop.permute.xlu0 %307
    %309 = vrot.lane.b32.xlu0 %v245, 32
    %v310 = vpop.permute.xlu0 %309
    %311 = vrot.lane.b32.xlu0 %v248, 32
    %v312 = vpop.permute.xlu0 %311
    %313 = vrot.lane.b32.xlu0 %v250, 32
    %v314 = vpop.permute.xlu0 %313
    %315 = vrot.lane.b32.xlu0 %v253, 32
    %v316 = vpop.permute.xlu0 %315
    %317 = vrot.lane.b32.xlu0 %v255, 32
    %v318 = vpop.permute.xlu0 %317
    %319 = vrot.lane.b32.xlu0 %v258, 32
    %v320 = vpop.permute.xlu0 %319
    %321 = vrot.lane.b32.xlu0 %v260, 32
    %v322 = vpop.permute.xlu0 %321
    %323 = vrot.lane.b32.xlu0 %v263, 32
    %v324 = vpop.permute.xlu0 %323
    %325 = vrot.lane.b32.xlu0 %v265, 32
    %v326 = vpop.permute.xlu0 %325
    %327 = vrot.lane.b32.xlu0 %v268, 32
    %v328 = vpop.permute.xlu0 %327
    %329 = vrot.lane.b32.xlu0 %v270, 32
    %v330 = vpop.permute.xlu0 %329
    %331 = vrot.lane.b32.xlu0 %v273, 32
    %v332 = vpop.permute.xlu0 %331
    %333 = vrot.lane.b32.xlu0 %v275, 32
    %v334 = vpop.permute.xlu0 %333
    %335 = vrot.lane.b32.xlu0 %v278, 32
    %v336 = vpop.permute.xlu0 %335
    %337 = vrot.lane.b32.xlu0 %v280, 32
    %v338 = vpop.permute.xlu0 %337
    %339 = vrot.lane.b32.xlu0 %v283, 32
    %v340 = vpop.permute.xlu0 %339
    %341 = vrot.lane.b32.xlu0 %v285, 32
    %v342 = vpop.permute.xlu0 %341
    %343 = vrot.lane.b32.xlu0 %v288, 32
    %v344 = vpop.permute.xlu0 %343
    %v345 = vmax.f32 %v223, %v292
    %v346 = vmax.f32 %v225, %v294
    %v347 = vmax.f32 %v228, %v296
    %v348 = vmax.f32 %v230, %v298
    %v349 = vmax.f32 %v233, %v300
    %v350 = vmax.f32 %v235, %v302
    %v351 = vmax.f32 %v238, %v304
    %v352 = vmax.f32 %v240, %v306
    %v353 = vmax.f32 %v243, %v308
    %v354 = vmax.f32 %v245, %v310
    %v355 = vmax.f32 %v248, %v312
    %v356 = vmax.f32 %v250, %v314
    %v357 = vmax.f32 %v253, %v316
    %v358 = vmax.f32 %v255, %v318
    %v359 = vmax.f32 %v258, %v320
    %v360 = vmax.f32 %v260, %v322
    %v361 = vmax.f32 %v263, %v324
    %v362 = vmax.f32 %v265, %v326
    %v363 = vmax.f32 %v268, %v328
    %v364 = vmax.f32 %v270, %v330
    %v365 = vmax.f32 %v273, %v332
    %v366 = vmax.f32 %v275, %v334
    %v367 = vmax.f32 %v278, %v336
    %v368 = vmax.f32 %v280, %v338
    %v369 = vmax.f32 %v283, %v340
    %v370 = vmax.f32 %v285, %v342
    %v371 = vmax.f32 %v288, %v344
    %372 = vrot.lane.b32.xlu0 %v345, 64
    %v373 = vpop.permute.xlu0 %372
    %374 = vrot.lane.b32.xlu0 %v346, 64
    %v375 = vpop.permute.xlu0 %374
    %376 = vrot.lane.b32.xlu0 %v347, 64
    %v377 = vpop.permute.xlu0 %376
    %378 = vrot.lane.b32.xlu0 %v348, 64
    %v379 = vpop.permute.xlu0 %378
    %380 = vrot.lane.b32.xlu0 %v349, 64
    %v381 = vpop.permute.xlu0 %380
    %382 = vrot.lane.b32.xlu0 %v350, 64
    %v383 = vpop.permute.xlu0 %382
    %384 = vrot.lane.b32.xlu0 %v351, 64
    %v385 = vpop.permute.xlu0 %384
    %386 = vrot.lane.b32.xlu0 %v352, 64
    %v387 = vpop.permute.xlu0 %386
    %388 = vrot.lane.b32.xlu0 %v353, 64
    %v389 = vpop.permute.xlu0 %388
    %390 = vrot.lane.b32.xlu0 %v354, 64
    %v391 = vpop.permute.xlu0 %390
    %392 = vrot.lane.b32.xlu0 %v355, 64
    %v393 = vpop.permute.xlu0 %392
    %394 = vrot.lane.b32.xlu0 %v356, 64
    %v395 = vpop.permute.xlu0 %394
    %396 = vrot.lane.b32.xlu0 %v357, 64
    %v397 = vpop.permute.xlu0 %396
    %398 = vrot.lane.b32.xlu0 %v358, 64
    %v399 = vpop.permute.xlu0 %398
    %400 = vrot.lane.b32.xlu0 %v359, 64
    %v401 = vpop.permute.xlu0 %400
    %402 = vrot.lane.b32.xlu0 %v360, 64
    %v403 = vpop.permute.xlu0 %402
    %404 = vrot.lane.b32.xlu0 %v361, 64
    %v405 = vpop.permute.xlu0 %404
    %406 = vrot.lane.b32.xlu0 %v362, 64
    %v407 = vpop.permute.xlu0 %406
    %408 = vrot.lane.b32.xlu0 %v363, 64
    %v409 = vpop.permute.xlu0 %408
    %410 = vrot.lane.b32.xlu0 %v364, 64
    %v411 = vpop.permute.xlu0 %410
    %412 = vrot.lane.b32.xlu0 %v365, 64
    %v413 = vpop.permute.xlu0 %412
    %414 = vrot.lane.b32.xlu0 %v366, 64
    %v415 = vpop.permute.xlu0 %414
    %416 = vrot.lane.b32.xlu0 %v367, 64
    %v417 = vpop.permute.xlu0 %416
    %418 = vrot.lane.b32.xlu0 %v368, 64
    %v419 = vpop.permute.xlu0 %418
    %420 = vrot.lane.b32.xlu0 %v369, 64
    %v421 = vpop.permute.xlu0 %420
    %422 = vrot.lane.b32.xlu0 %v370, 64
    %v423 = vpop.permute.xlu0 %422
    %424 = vrot.lane.b32.xlu0 %v371, 64
    %v425 = vpop.permute.xlu0 %424
    %v426 = vmax.f32 %v345, %v373
    %v427 = vmax.f32 %v346, %v375
    %v428 = vmax.f32 %v347, %v377
    %v429 = vmax.f32 %v348, %v379
    %v430 = vmax.f32 %v349, %v381
    %v431 = vmax.f32 %v350, %v383
    %v432 = vmax.f32 %v351, %v385
    %v433 = vmax.f32 %v352, %v387
    %v434 = vmax.f32 %v353, %v389
    %v435 = vmax.f32 %v354, %v391
    %v436 = vmax.f32 %v355, %v393
    %v437 = vmax.f32 %v356, %v395
    %v438 = vmax.f32 %v357, %v397
    %v439 = vmax.f32 %v358, %v399
    %v440 = vmax.f32 %v359, %v401
    %v441 = vmax.f32 %v360, %v403
    %v442 = vmax.f32 %v361, %v405
    %v443 = vmax.f32 %v362, %v407
    %v444 = vmax.f32 %v363, %v409
    %v445 = vmax.f32 %v364, %v411
    %v446 = vmax.f32 %v365, %v413
    %v447 = vmax.f32 %v366, %v415
    %v448 = vmax.f32 %v367, %v417
    %v449 = vmax.f32 %v368, %v419
    %v450 = vmax.f32 %v369, %v421
    %v451 = vmax.f32 %v370, %v423
    %v452 = vmax.f32 %v371, %v425
    %v453 = vld [vmem:[%s3] sm:$0x1]
    %v455 = vperm.slane %v453, 0
    %v457 = vadd.f32 %v426, %v455
    %v458 = vadd.f32 %v427, %v455
    %v459 = vadd.f32 %v428, %v455
    %v460 = vadd.f32 %v429, %v455
    %v461 = vadd.f32 %v430, %v455
    %v462 = vadd.f32 %v431, %v455
    %v463 = vadd.f32 %v432, %v455
    %v464 = vadd.f32 %v433, %v455
    %v465 = vadd.f32 %v434, %v455
    %v466 = vadd.f32 %v435, %v455
    %v467 = vadd.f32 %v436, %v455
    %v468 = vadd.f32 %v437, %v455
    %v469 = vadd.f32 %v438, %v455
    %v470 = vadd.f32 %v439, %v455
    %v471 = vadd.f32 %v440, %v455
    %v472 = vadd.f32 %v441, %v455
    %v473 = vadd.f32 %v442, %v455
    %v474 = vadd.f32 %v443, %v455
    %v475 = vadd.f32 %v444, %v455
    %v476 = vadd.f32 %v445, %v455
    %v477 = vadd.f32 %v446, %v455
    %v478 = vadd.f32 %v447, %v455
    %v479 = vadd.f32 %v448, %v455
    %v480 = vadd.f32 %v449, %v455
    %v481 = vadd.f32 %v450, %v455
    %v482 = vadd.f32 %v451, %v455
    %v483 = vadd.f32 %v452, %v455
    %v484 = vmax.f32 %v457, 0.0
    %v485 = vmax.f32 %v458, 0.0
    %v486 = vmax.f32 %v459, 0.0
    %v487 = vmax.f32 %v460, 0.0
    %v488 = vmax.f32 %v461, 0.0
    %v489 = vmax.f32 %v462, 0.0
    %v490 = vmax.f32 %v463, 0.0
    %v491 = vmax.f32 %v464, 0.0
    %v492 = vmax.f32 %v465, 0.0
    %v493 = vmax.f32 %v466, 0.0
    %v494 = vmax.f32 %v467, 0.0
    %v495 = vmax.f32 %v468, 0.0
    %v496 = vmax.f32 %v469, 0.0
    %v497 = vmax.f32 %v470, 0.0
    %v498 = vmax.f32 %v471, 0.0
    %v499 = vmax.f32 %v472, 0.0
    %v500 = vmax.f32 %v473, 0.0
    %v501 = vmax.f32 %v474, 0.0
    %v502 = vmax.f32 %v475, 0.0
    %v503 = vmax.f32 %v476, 0.0
    %v504 = vmax.f32 %v477, 0.0
    %v505 = vmax.f32 %v478, 0.0
    %v506 = vmax.f32 %v479, 0.0
    %v507 = vmax.f32 %v480, 0.0
    %v508 = vmax.f32 %v481, 0.0
    %v509 = vmax.f32 %v482, 0.0
    %v510 = vmax.f32 %v483, 0.0
    %v511 = vld [vmem:[%s1] sm:$0xff]
    %v512 = vld [vmem:[%s1 + $0x8] sm:$0xff]
    %v513 = vld [vmem:[%s1 + $0x10] sm:$0xff]
    %v514 = vld [vmem:[%s1 + $0x18] sm:$0xff]
    %v515 = vld [vmem:[%s1 + $0x20] sm:$0xff]
    %v516 = vld [vmem:[%s1 + $0x28] sm:$0xff]
    %v517 = vld [vmem:[%s1 + $0x30] sm:$0xff]
    %v518 = vld [vmem:[%s1 + $0x38] sm:$0xff]
    %v519 = vld [vmem:[%s1 + $0x40] sm:$0xff]
    %v520 = vld [vmem:[%s1 + $0x48] sm:$0xff]
    %v521 = vld [vmem:[%s1 + $0x50] sm:$0xff]
    %v522 = vld [vmem:[%s1 + $0x58] sm:$0xff]
    %v523 = vld [vmem:[%s1 + $0x60] sm:$0xff]
    %v524 = vld [vmem:[%s1 + $0x68] sm:$0xff]
    %v525 = vld [vmem:[%s1 + $0x70] sm:$0xff]
    %v526 = vld [vmem:[%s1 + $0x78] sm:$0xff]
    %v527 = vld [vmem:[%s1 + $0x80] sm:$0xff]
    %v528 = vld [vmem:[%s1 + $0x88] sm:$0xff]
    %v529 = vld [vmem:[%s1 + $0x90] sm:$0xff]
    %v530 = vld [vmem:[%s1 + $0x98] sm:$0xff]
    %v531 = vld [vmem:[%s1 + $0xa0] sm:$0xff]
    %v532 = vld [vmem:[%s1 + $0xa8] sm:$0xff]
    %v533 = vld [vmem:[%s1 + $0xb0] sm:$0xff]
    %v534 = vld [vmem:[%s1 + $0xb8] sm:$0xff]
    %v535 = vld [vmem:[%s1 + $0xc0] sm:$0xff]
    %v536 = vld [vmem:[%s1 + $0xc8] sm:$0xff]
    %v537 = vld [vmem:[%s1 + $0xd0] sm:$0xff]
    %539 = vset.pattern.permute.xlu0 0
    %540 = vperm.xlu0 %539, %v511
    %v541 = vpop.permute.xlu0 %540
    %544 = vset.pattern.permute.xlu0 0
    %545 = vperm.xlu0 %544, %v512
    %v546 = vpop.permute.xlu0 %545
    %549 = vset.pattern.permute.xlu0 0
    %550 = vperm.xlu0 %549, %v513
    %v551 = vpop.permute.xlu0 %550
    %554 = vset.pattern.permute.xlu0 0
    %555 = vperm.xlu0 %554, %v514
    %v556 = vpop.permute.xlu0 %555
    %559 = vset.pattern.permute.xlu0 0
    %560 = vperm.xlu0 %559, %v515
    %v561 = vpop.permute.xlu0 %560
    %564 = vset.pattern.permute.xlu0 0
    %565 = vperm.xlu0 %564, %v516
    %v566 = vpop.permute.xlu0 %565
    %569 = vset.pattern.permute.xlu0 0
    %570 = vperm.xlu0 %569, %v517
    %v571 = vpop.permute.xlu0 %570
    %574 = vset.pattern.permute.xlu0 0
    %575 = vperm.xlu0 %574, %v518
    %v576 = vpop.permute.xlu0 %575
    %579 = vset.pattern.permute.xlu0 0
    %580 = vperm.xlu0 %579, %v519
    %v581 = vpop.permute.xlu0 %580
    %584 = vset.pattern.permute.xlu0 0
    %585 = vperm.xlu0 %584, %v520
    %v586 = vpop.permute.xlu0 %585
    %589 = vset.pattern.permute.xlu0 0
    %590 = vperm.xlu0 %589, %v521
    %v591 = vpop.permute.xlu0 %590
    %594 = vset.pattern.permute.xlu0 0
    %595 = vperm.xlu0 %594, %v522
    %v596 = vpop.permute.xlu0 %595
    %599 = vset.pattern.permute.xlu0 0
    %600 = vperm.xlu0 %599, %v523
    %v601 = vpop.permute.xlu0 %600
    %604 = vset.pattern.permute.xlu0 0
    %605 = vperm.xlu0 %604, %v524
    %v606 = vpop.permute.xlu0 %605
    %609 = vset.pattern.permute.xlu0 0
    %610 = vperm.xlu0 %609, %v525
    %v611 = vpop.permute.xlu0 %610
    %614 = vset.pattern.permute.xlu0 0
    %615 = vperm.xlu0 %614, %v526
    %v616 = vpop.permute.xlu0 %615
    %619 = vset.pattern.permute.xlu0 0
    %620 = vperm.xlu0 %619, %v527
    %v621 = vpop.permute.xlu0 %620
    %624 = vset.pattern.permute.xlu0 0
    %625 = vperm.xlu0 %624, %v528
    %v626 = vpop.permute.xlu0 %625
    %629 = vset.pattern.permute.xlu0 0
    %630 = vperm.xlu0 %629, %v529
    %v631 = vpop.permute.xlu0 %630
    %634 = vset.pattern.permute.xlu0 0
    %635 = vperm.xlu0 %634, %v530
    %v636 = vpop.permute.xlu0 %635
    %639 = vset.pattern.permute.xlu0 0
    %640 = vperm.xlu0 %639, %v531
    %v641 = vpop.permute.xlu0 %640
    %644 = vset.pattern.permute.xlu0 0
    %645 = vperm.xlu0 %644, %v532
    %v646 = vpop.permute.xlu0 %645
    %649 = vset.pattern.permute.xlu0 0
    %650 = vperm.xlu0 %649, %v533
    %v651 = vpop.permute.xlu0 %650
    %654 = vset.pattern.permute.xlu0 0
    %655 = vperm.xlu0 %654, %v534
    %v656 = vpop.permute.xlu0 %655
    %659 = vset.pattern.permute.xlu0 0
    %660 = vperm.xlu0 %659, %v535
    %v661 = vpop.permute.xlu0 %660
    %664 = vset.pattern.permute.xlu0 0
    %665 = vperm.xlu0 %664, %v536
    %v666 = vpop.permute.xlu0 %665
    %669 = vset.pattern.permute.xlu0 0
    %670 = vperm.xlu0 %669, %v537
    %v671 = vpop.permute.xlu0 %670
    %v673 = vmul.f32 %v484, %v541
    %v674 = vmul.f32 %v485, %v546
    %v675 = vmul.f32 %v486, %v551
    %v676 = vmul.f32 %v487, %v556
    %v677 = vmul.f32 %v488, %v561
    %v678 = vmul.f32 %v489, %v566
    %v679 = vmul.f32 %v490, %v571
    %v680 = vmul.f32 %v491, %v576
    %v681 = vmul.f32 %v492, %v581
    %v682 = vmul.f32 %v493, %v586
    %v683 = vmul.f32 %v494, %v591
    %v684 = vmul.f32 %v495, %v596
    %v685 = vmul.f32 %v496, %v601
    %v686 = vmul.f32 %v497, %v606
    %v687 = vmul.f32 %v498, %v611
    %v688 = vmul.f32 %v499, %v616
    %v689 = vmul.f32 %v500, %v621
    %v690 = vmul.f32 %v501, %v626
    %v691 = vmul.f32 %v502, %v631
    %v692 = vmul.f32 %v503, %v636
    %v693 = vmul.f32 %v504, %v641
    %v694 = vmul.f32 %v505, %v646
    %v695 = vmul.f32 %v506, %v651
    %v696 = vmul.f32 %v507, %v656
    %v697 = vmul.f32 %v508, %v661
    %v698 = vmul.f32 %v509, %v666
    %v699 = vmul.f32 %v510, %v671
    %v700 = vpack.c.bf16 %v673, %v673
    %v701 = vpack.c.bf16 %v674, %v674
    %v702 = vpack.c.bf16 %v675, %v675
    %v703 = vpack.c.bf16 %v676, %v676
    %v704 = vpack.c.bf16 %v677, %v677
    %v705 = vpack.c.bf16 %v678, %v678
    %v706 = vpack.c.bf16 %v679, %v679
    %v707 = vpack.c.bf16 %v680, %v680
    %v708 = vpack.c.bf16 %v681, %v681
    %v709 = vpack.c.bf16 %v682, %v682
    %v710 = vpack.c.bf16 %v683, %v683
    %v711 = vpack.c.bf16 %v684, %v684
    %v712 = vpack.c.bf16 %v685, %v685
    %v713 = vpack.c.bf16 %v686, %v686
    %v714 = vpack.c.bf16 %v687, %v687
    %v715 = vpack.c.bf16 %v688, %v688
    %v716 = vpack.c.bf16 %v689, %v689
    %v717 = vpack.c.bf16 %v690, %v690
    %v718 = vpack.c.bf16 %v691, %v691
    %v719 = vpack.c.bf16 %v692, %v692
    %v720 = vpack.c.bf16 %v693, %v693
    %v721 = vpack.c.bf16 %v694, %v694
    %v722 = vpack.c.bf16 %v695, %v695
    %v723 = vpack.c.bf16 %v696, %v696
    %v724 = vpack.c.bf16 %v697, %v697
    %v725 = vpack.c.bf16 %v698, %v698
    %v726 = vpack.c.bf16 %v699, %v699
    %v734 = vunpack.c.l.b16 %v700
    %v735 = vunpack.c.l.b16 %v701
    %v736 = vunpack.c.l.b16 %v702
    %v737 = vunpack.c.l.b16 %v703
    %v738 = vunpack.c.l.b16 %v704
    %v739 = vunpack.c.l.b16 %v705
    %v740 = vunpack.c.l.b16 %v706
    %v741 = vpack.c.b16 %v735, %v734
    %v742 = vpack.c.b16 %v737, %v736
    %v743 = vpack.c.b16 %v739, %v738
    %v744 = vpack.c.b16 %v740, %v740
    %v751 = vunpack.c.l.b16 %v707
    %v752 = vunpack.c.l.b16 %v708
    %v753 = vunpack.c.l.b16 %v709
    %v754 = vunpack.c.l.b16 %v710
    %v755 = vunpack.c.l.b16 %v711
    %v756 = vunpack.c.l.b16 %v712
    %v757 = vpack.c.b16 %v751, %v740
    %v758 = vpack.c.b16 %v753, %v752
    %v759 = vpack.c.b16 %v755, %v754
    %v760 = vpack.c.b16 %v756, %v756
    %vm761 = vcmask 1046528
    %v762 = vrot.slane %v757, 1
    %v763 = vrot.slane %v758, 1
    %v764 = vsel %vm761, %v762, %v763
    %v765 = vrot.slane %v759, 1
    %v766 = vsel %vm761, %v763, %v765
    %v767 = vrot.slane %v760, 1
    %v768 = vsel %vm761, %v765, %v767
    %769 = vrot.lane.b32.xlu0 %v764, 32
    %v770 = vpop.permute.xlu0 %769
    %771 = vrot.lane.b32.xlu0 %v766, 32
    %v772 = vpop.permute.xlu0 %771
    %773 = vrot.lane.b32.xlu0 %v768, 32
    %v774 = vpop.permute.xlu0 %773
    %775 = vrot.lane.b32.xlu0 %v767, 32
    %v776 = vpop.permute.xlu0 %775
    %v777 = vrot.slane %v741, 1
    %v778 = vrot.slane %v742, 1
    %v779 = vsel %vm761, %v777, %v778
    %v780 = vrot.slane %v743, 1
    %v781 = vsel %vm761, %v778, %v780
    %v782 = vrot.slane %v744, 1
    %v783 = vsel %vm761, %v780, %v782
    %784 = vrot.lane.b32.xlu0 %v779, 64
    %v785 = vpop.permute.xlu0 %784
    %786 = vrot.lane.b32.xlu0 %v781, 64
    %v787 = vpop.permute.xlu0 %786
    %788 = vrot.lane.b32.xlu0 %v783, 64
    %v789 = vpop.permute.xlu0 %788
    %790 = vrot.lane.b32.xlu0 %v782, 64
    %v791 = vpop.permute.xlu0 %790
    %vm792 = vcmask 1045504
    %v793 = vrot.slane %v757, 2
    %v794 = vrot.slane %v758, 2
    %v795 = vsel %vm792, %v793, %v794
    %v796 = vrot.slane %v759, 2
    %v797 = vsel %vm792, %v794, %v796
    %v798 = vrot.slane %v760, 2
    %v799 = vsel %vm792, %v796, %v798
    %800 = vrot.lane.b32.xlu0 %v795, 96
    %v801 = vpop.permute.xlu0 %800
    %802 = vrot.lane.b32.xlu0 %v797, 96
    %v803 = vpop.permute.xlu0 %802
    %804 = vrot.lane.b32.xlu0 %v799, 96
    %v805 = vpop.permute.xlu0 %804
    %806 = vrot.lane.b32.xlu0 %v798, 96
    %v807 = vpop.permute.xlu0 %806
    %v814 = vunpack.c.l.b16 %v713
    %v815 = vunpack.c.l.b16 %v714
    %v816 = vunpack.c.l.b16 %v715
    %v817 = vunpack.c.l.b16 %v716
    %v818 = vunpack.c.l.b16 %v717
    %v819 = vunpack.c.l.b16 %v718
    %v820 = vpack.c.b16 %v814, %v756
    %v821 = vpack.c.b16 %v816, %v815
    %v822 = vpack.c.b16 %v818, %v817
    %v823 = vpack.c.b16 %v819, %v819
    %v824 = vrot.slane %v820, 2
    %v825 = vrot.slane %v821, 2
    %v826 = vsel %vm792, %v824, %v825
    %v827 = vrot.slane %v822, 2
    %v828 = vsel %vm792, %v825, %v827
    %v829 = vrot.slane %v823, 2
    %v830 = vsel %vm792, %v827, %v829
    %v837 = vunpack.c.l.b16 %v719
    %v838 = vunpack.c.l.b16 %v720
    %v839 = vunpack.c.l.b16 %v721
    %v840 = vunpack.c.l.b16 %v722
    %v841 = vunpack.c.l.b16 %v723
    %v842 = vunpack.c.l.b16 %v724
    %v843 = vpack.c.b16 %v837, %v819
    %v844 = vpack.c.b16 %v839, %v838
    %v845 = vpack.c.b16 %v841, %v840
    %v846 = vpack.c.b16 %v842, %v842
    %vm847 = vcmask 1044480
    %v848 = vrot.slane %v843, 3
    %v849 = vrot.slane %v844, 3
    %v850 = vsel %vm847, %v848, %v849
    %v851 = vrot.slane %v845, 3
    %v852 = vsel %vm847, %v849, %v851
    %v853 = vrot.slane %v846, 3
    %v854 = vsel %vm847, %v851, %v853
    %855 = vrot.lane.b32.xlu0 %v850, 32
    %v856 = vpop.permute.xlu0 %855
    %857 = vrot.lane.b32.xlu0 %v852, 32
    %v858 = vpop.permute.xlu0 %857
    %859 = vrot.lane.b32.xlu0 %v854, 32
    %v860 = vpop.permute.xlu0 %859
    %861 = vrot.lane.b32.xlu0 %v853, 32
    %v862 = vpop.permute.xlu0 %861
    %v863 = vrot.slane %v820, 3
    %v864 = vrot.slane %v821, 3
    %v865 = vsel %vm847, %v863, %v864
    %v866 = vrot.slane %v822, 3
    %v867 = vsel %vm847, %v864, %v866
    %v868 = vrot.slane %v823, 3
    %v869 = vsel %vm847, %v866, %v868
    %870 = vrot.lane.b32.xlu0 %v865, 64
    %v871 = vpop.permute.xlu0 %870
    %872 = vrot.lane.b32.xlu0 %v867, 64
    %v873 = vpop.permute.xlu0 %872
    %874 = vrot.lane.b32.xlu0 %v869, 64
    %v875 = vpop.permute.xlu0 %874
    %876 = vrot.lane.b32.xlu0 %v868, 64
    %v877 = vpop.permute.xlu0 %876
    %v879 = vunpack.c.l.b16 %v725
    %v880 = vpack.c.b16 %v838, %v837
    %v881 = vpack.c.b16 %v840, %v839
    %v882 = vpack.c.b16 %v842, %v841
    %v883 = vpack.c.b16 %v879, %v879
    %884 = vrot.lane.b32.xlu0 %v880, 96
    %v885 = vpop.permute.xlu0 %884
    %886 = vrot.lane.b32.xlu0 %v881, 96
    %v887 = vpop.permute.xlu0 %886
    %888 = vrot.lane.b32.xlu0 %v882, 96
    %v889 = vpop.permute.xlu0 %888
    %890 = vrot.lane.b32.xlu0 %v883, 96
    %v891 = vpop.permute.xlu0 %890
    %v892 = vpack.c.b16 %v736, %v735
    %v893 = vpack.c.b16 %v738, %v737
    %v894 = vpack.c.b16 %v740, %v739
    %v895 = vpack.c.b16 %v751, %v751
    %v896 = vrot.slane %v892, 1
    %v897 = vrot.slane %v893, 1
    %v898 = vsel %vm761, %v896, %v897
    %v899 = vrot.slane %v894, 1
    %v900 = vsel %vm761, %v897, %v899
    %v901 = vrot.slane %v895, 1
    %v902 = vsel %vm761, %v899, %v901
    %v903 = vpack.c.b16 %v752, %v751
    %v904 = vpack.c.b16 %v754, %v753
    %v905 = vpack.c.b16 %v756, %v755
    %v906 = vpack.c.b16 %v814, %v814
    %v907 = vrot.slane %v903, 2
    %v908 = vrot.slane %v904, 2
    %v909 = vsel %vm792, %v907, %v908
    %v910 = vrot.slane %v905, 2
    %v911 = vsel %vm792, %v908, %v910
    %v912 = vrot.slane %v906, 2
    %v913 = vsel %vm792, %v910, %v912
    %914 = vrot.lane.b32.xlu0 %v909, 32
    %v915 = vpop.permute.xlu0 %914
    %916 = vrot.lane.b32.xlu0 %v911, 32
    %v917 = vpop.permute.xlu0 %916
    %918 = vrot.lane.b32.xlu0 %v913, 32
    %v919 = vpop.permute.xlu0 %918
    %920 = vrot.lane.b32.xlu0 %v912, 32
    %v921 = vpop.permute.xlu0 %920
    %v922 = vrot.slane %v892, 2
    %v923 = vrot.slane %v893, 2
    %v924 = vsel %vm792, %v922, %v923
    %v925 = vrot.slane %v894, 2
    %v926 = vsel %vm792, %v923, %v925
    %v927 = vrot.slane %v895, 2
    %v928 = vsel %vm792, %v925, %v927
    %929 = vrot.lane.b32.xlu0 %v924, 64
    %v930 = vpop.permute.xlu0 %929
    %931 = vrot.lane.b32.xlu0 %v926, 64
    %v932 = vpop.permute.xlu0 %931
    %933 = vrot.lane.b32.xlu0 %v928, 64
    %v934 = vpop.permute.xlu0 %933
    %935 = vrot.lane.b32.xlu0 %v927, 64
    %v936 = vpop.permute.xlu0 %935
    %v937 = vrot.slane %v903, 3
    %v938 = vrot.slane %v904, 3
    %v939 = vsel %vm847, %v937, %v938
    %v940 = vrot.slane %v905, 3
    %v941 = vsel %vm847, %v938, %v940
    %v942 = vrot.slane %v906, 3
    %v943 = vsel %vm847, %v940, %v942
    %944 = vrot.lane.b32.xlu0 %v939, 96
    %v945 = vpop.permute.xlu0 %944
    %946 = vrot.lane.b32.xlu0 %v941, 96
    %v947 = vpop.permute.xlu0 %946
    %948 = vrot.lane.b32.xlu0 %v943, 96
    %v949 = vpop.permute.xlu0 %948
    %950 = vrot.lane.b32.xlu0 %v942, 96
    %v951 = vpop.permute.xlu0 %950
    %v952 = vpack.c.b16 %v815, %v814
    %v953 = vpack.c.b16 %v817, %v816
    %v954 = vpack.c.b16 %v819, %v818
    %v955 = vpack.c.b16 %v837, %v837
    %v956 = vrot.slane %v952, 3
    %v957 = vrot.slane %v953, 3
    %v958 = vsel %vm847, %v956, %v957
    %v959 = vrot.slane %v954, 3
    %v960 = vsel %vm847, %v957, %v959
    %v961 = vrot.slane %v955, 3
    %v962 = vsel %vm847, %v959, %v961
    %v964 = vunpack.c.l.b16 %v726
    %v965 = vpack.c.b16 %v879, %v842
    %v966 = vpack.c.b16 %v964, %v964
    %967 = vrot.lane.b32.xlu0 %v844, 32
    %v968 = vpop.permute.xlu0 %967
    %969 = vrot.lane.b32.xlu0 %v845, 32
    %v970 = vpop.permute.xlu0 %969
    %971 = vrot.lane.b32.xlu0 %v965, 32
    %v972 = vpop.permute.xlu0 %971
    %973 = vrot.lane.b32.xlu0 %v966, 32
    %v974 = vpop.permute.xlu0 %973
    %v975 = vpack.c.b16 %v838, %v838
    %976 = vrot.lane.b32.xlu0 %v821, 64
    %v977 = vpop.permute.xlu0 %976
    %978 = vrot.lane.b32.xlu0 %v822, 64
    %v979 = vpop.permute.xlu0 %978
    %980 = vrot.lane.b32.xlu0 %v843, 64
    %v981 = vpop.permute.xlu0 %980
    %982 = vrot.lane.b32.xlu0 %v975, 64
    %v983 = vpop.permute.xlu0 %982
    %v984 = vrot.slane %v844, 1
    %v985 = vrot.slane %v845, 1
    %v986 = vsel %vm761, %v984, %v985
    %v987 = vrot.slane %v965, 1
    %v988 = vsel %vm761, %v985, %v987
    %v989 = vrot.slane %v966, 1
    %v990 = vsel %vm761, %v987, %v989
    %991 = vrot.lane.b32.xlu0 %v986, 96
    %v992 = vpop.permute.xlu0 %991
    %993 = vrot.lane.b32.xlu0 %v988, 96
    %v994 = vpop.permute.xlu0 %993
    %995 = vrot.lane.b32.xlu0 %v990, 96
    %v996 = vpop.permute.xlu0 %995
    %997 = vrot.lane.b32.xlu0 %v989, 96
    %v998 = vpop.permute.xlu0 %997
    %vm999 = vcmask 261120
    %v1002 = vsel %vm999, %v741, %v770
    %v1005 = vsel %vm999, %v742, %v772
    %v1008 = vsel %vm999, %v743, %v774
    %v1011 = vsel %vm999, %v744, %v776
    %v1013 = vsel %vm170, %v1002, %v785
    %v1015 = vsel %vm170, %v1005, %v787
    %v1017 = vsel %vm170, %v1008, %v789
    %v1019 = vsel %vm170, %v1011, %v791
    %vm1020 = vcmask 785408
    %v1022 = vsel %vm1020, %v1013, %v801
    %v1025 = vsel %vm1020, %v1015, %v803
    %v1028 = vsel %vm1020, %v1017, %v805
    %v1031 = vsel %vm1020, %v1019, %v807
    %v1035 = vsel %vm999, %v826, %v856
    %v1038 = vsel %vm999, %v828, %v858
    %v1041 = vsel %vm999, %v830, %v860
    %v1044 = vsel %vm999, %v829, %v862
    %v1046 = vsel %vm170, %v1035, %v871
    %v1048 = vsel %vm170, %v1038, %v873
    %v1050 = vsel %vm170, %v1041, %v875
    %v1052 = vsel %vm170, %v1044, %v877
    %v1054 = vsel %vm1020, %v1046, %v885
    %v1057 = vsel %vm1020, %v1048, %v887
    %v1060 = vsel %vm1020, %v1050, %v889
    %v1063 = vsel %vm1020, %v1052, %v891
    %v1067 = vsel %vm999, %v898, %v915
    %v1070 = vsel %vm999, %v900, %v917
    %v1073 = vsel %vm999, %v902, %v919
    %v1076 = vsel %vm999, %v901, %v921
    %v1078 = vsel %vm170, %v1067, %v930
    %v1080 = vsel %vm170, %v1070, %v932
    %v1082 = vsel %vm170, %v1073, %v934
    %v1084 = vsel %vm170, %v1076, %v936
    %v1086 = vsel %vm1020, %v1078, %v945
    %v1089 = vsel %vm1020, %v1080, %v947
    %v1092 = vsel %vm1020, %v1082, %v949
    %v1095 = vsel %vm1020, %v1084, %v951
    %v1099 = vsel %vm999, %v958, %v968
    %v1102 = vsel %vm999, %v960, %v970
    %v1105 = vsel %vm999, %v962, %v972
    %v1108 = vsel %vm999, %v961, %v974
    %v1110 = vsel %vm170, %v1099, %v977
    %v1112 = vsel %vm170, %v1102, %v979
    %v1114 = vsel %vm170, %v1105, %v981
    %v1116 = vsel %vm170, %v1108, %v983
    %v1118 = vsel %vm1020, %v1110, %v992
    %v1121 = vsel %vm1020, %v1112, %v994
    %v1124 = vsel %vm1020, %v1114, %v996
    %v1127 = vsel %vm1020, %v1116, %v998
    %v1129 = vld [vmem:[%s4] sm:$0xff]
    %v1130 = vld [vmem:[%s4 + $0x8] sm:$0xff]
    %v1131 = vld [vmem:[%s4 + $0x10] sm:$0xff]
    %v1132 = vld [vmem:[%s4 + $0x18] sm:$0xff]
    %v1133 = vld [vmem:[%s4 + $0x20] sm:$0xff]
    %v1134 = vld [vmem:[%s4 + $0x28] sm:$0xff]
    %v1135 = vld [vmem:[%s4 + $0x30] sm:$0xff]
    %v1136 = vld [vmem:[%s4 + $0x38] sm:$0xff]
    %v1137 = vld [vmem:[%s4 + $0x40] sm:$0xff]
    %v1138 = vld [vmem:[%s4 + $0x48] sm:$0xff]
    %v1139 = vld [vmem:[%s4 + $0x50] sm:$0xff]
    %v1140 = vld [vmem:[%s4 + $0x58] sm:$0xff]
    %v1141 = vld [vmem:[%s4 + $0x60] sm:$0xff]
    %v1142 = vld [vmem:[%s4 + $0x68] sm:$0xff]
    %v1143 = vld [vmem:[%s4 + $0x70] sm:$0xff]
    %v1144 = vld [vmem:[%s4 + $0x78] sm:$0xff]
    %v1145 = vld [vmem:[%s4 + $0x80] sm:$0xff]
    %v1146 = vld [vmem:[%s4 + $0x88] sm:$0xff]
    %v1147 = vld [vmem:[%s4 + $0x90] sm:$0xff]
    %v1148 = vld [vmem:[%s4 + $0x98] sm:$0xff]
    %v1149 = vld [vmem:[%s4 + $0xa0] sm:$0xff]
    %v1150 = vld [vmem:[%s4 + $0xa8] sm:$0xff]
    %v1151 = vld [vmem:[%s4 + $0xb0] sm:$0xff]
    %v1152 = vld [vmem:[%s4 + $0xb8] sm:$0xff]
    %v1153 = vld [vmem:[%s4 + $0xc0] sm:$0xff]
    %v1154 = vld [vmem:[%s4 + $0xc8] sm:$0xff]
    %v1155 = vld [vmem:[%s4 + $0xd0] sm:$0xff]
    %v1156 = vld [vmem:[%s4 + $0xd8] sm:$0xff]
    %v1157 = vld [vmem:[%s4 + $0xe0] sm:$0xff]
    %v1158 = vld [vmem:[%s4 + $0xe8] sm:$0xff]
    %v1159 = vld [vmem:[%s4 + $0xf0] sm:$0xff]
    %v1160 = vld [vmem:[%s4 + $0xf8] sm:$0xff]
    %v1161 = vld [vmem:[%s4 + $0x100] sm:$0xff]
    %v1162 = vld [vmem:[%s4 + $0x108] sm:$0xff]
    %v1163 = vld [vmem:[%s4 + $0x110] sm:$0xff]
    %v1164 = vld [vmem:[%s4 + $0x118] sm:$0xff]
    %v1165 = vld [vmem:[%s4 + $0x120] sm:$0xff]
    %v1166 = vld [vmem:[%s4 + $0x128] sm:$0xff]
    %v1167 = vld [vmem:[%s4 + $0x130] sm:$0xff]
    %v1168 = vld [vmem:[%s4 + $0x138] sm:$0xff]
    %v1169 = vld [vmem:[%s4 + $0x140] sm:$0xff]
    %v1170 = vld [vmem:[%s4 + $0x148] sm:$0xff]
    %v1171 = vld [vmem:[%s4 + $0x150] sm:$0xff]
    %v1172 = vld [vmem:[%s4 + $0x158] sm:$0xff]
    %v1173 = vld [vmem:[%s4 + $0x160] sm:$0xff]
    %v1174 = vld [vmem:[%s4 + $0x168] sm:$0xff]
    %v1175 = vld [vmem:[%s4 + $0x170] sm:$0xff]
    %v1176 = vld [vmem:[%s4 + $0x178] sm:$0xff]
    %v1177 = vld [vmem:[%s4 + $0x180] sm:$0xff]
    %v1178 = vld [vmem:[%s4 + $0x188] sm:$0xff]
    %v1179 = vld [vmem:[%s4 + $0x190] sm:$0xff]
    %v1180 = vld [vmem:[%s4 + $0x198] sm:$0xff]
    %v1181 = vld [vmem:[%s4 + $0x1a0] sm:$0xff]
    %v1182 = vld [vmem:[%s4 + $0x1a8] sm:$0xff]
    %v1183 = vld [vmem:[%s4 + $0x1b0] sm:$0xff]
    %v1184 = vld [vmem:[%s4 + $0x1b8] sm:$0xff]
    %v1185 = vld [vmem:[%s4 + $0x1c0] sm:$0xff]
    %v1186 = vld [vmem:[%s4 + $0x1c8] sm:$0xff]
    %v1187 = vld [vmem:[%s4 + $0x1d0] sm:$0xff]
    %v1188 = vld [vmem:[%s4 + $0x1d8] sm:$0xff]
    %v1189 = vld [vmem:[%s4 + $0x1e0] sm:$0xff]
    %v1190 = vld [vmem:[%s4 + $0x1e8] sm:$0xff]
    %v1191 = vld [vmem:[%s4 + $0x1f0] sm:$0xff]
    %v1192 = vld [vmem:[%s4 + $0x1f8] sm:$0xff]
    %v1257 = vunpack.c.l.b16 %v1129
    %v1258 = vunpack.c.h.b16 %v1129
    %v1259 = vunpack.c.l.b16 %v1130
    %v1260 = vunpack.c.h.b16 %v1130
    %v1261 = vunpack.c.l.b16 %v1131
    %v1262 = vunpack.c.h.b16 %v1131
    %v1263 = vunpack.c.l.b16 %v1132
    %v1264 = vunpack.c.h.b16 %v1132
    %v1265 = vunpack.c.l.b16 %v1133
    %v1266 = vunpack.c.h.b16 %v1133
    %v1267 = vunpack.c.l.b16 %v1134
    %v1268 = vunpack.c.h.b16 %v1134
    %v1269 = vunpack.c.l.b16 %v1135
    %v1270 = vunpack.c.h.b16 %v1135
    %v1271 = vunpack.c.l.b16 %v1136
    %v1272 = vunpack.c.h.b16 %v1136
    %v1273 = vunpack.c.l.b16 %v1137
    %v1274 = vunpack.c.h.b16 %v1137
    %v1275 = vunpack.c.l.b16 %v1138
    %v1276 = vunpack.c.h.b16 %v1138
    %v1277 = vunpack.c.l.b16 %v1139
    %v1278 = vunpack.c.h.b16 %v1139
    %v1279 = vunpack.c.l.b16 %v1140
    %v1280 = vunpack.c.h.b16 %v1140
    %v1281 = vunpack.c.l.b16 %v1141
    %v1282 = vunpack.c.h.b16 %v1141
    %v1283 = vunpack.c.l.b16 %v1142
    %v1284 = vunpack.c.h.b16 %v1142
    %v1285 = vunpack.c.l.b16 %v1143
    %v1286 = vunpack.c.h.b16 %v1143
    %v1287 = vunpack.c.l.b16 %v1144
    %v1288 = vunpack.c.h.b16 %v1144
    %v1289 = vunpack.c.l.b16 %v1145
    %v1290 = vunpack.c.h.b16 %v1145
    %v1291 = vunpack.c.l.b16 %v1146
    %v1292 = vunpack.c.h.b16 %v1146
    %v1293 = vunpack.c.l.b16 %v1147
    %v1294 = vunpack.c.h.b16 %v1147
    %v1295 = vunpack.c.l.b16 %v1148
    %v1296 = vunpack.c.h.b16 %v1148
    %v1297 = vunpack.c.l.b16 %v1149
    %v1298 = vunpack.c.h.b16 %v1149
    %v1299 = vunpack.c.l.b16 %v1150
    %v1300 = vunpack.c.h.b16 %v1150
    %v1301 = vunpack.c.l.b16 %v1151
    %v1302 = vunpack.c.h.b16 %v1151
    %v1303 = vunpack.c.l.b16 %v1152
    %v1304 = vunpack.c.h.b16 %v1152
    %v1305 = vunpack.c.l.b16 %v1153
    %v1306 = vunpack.c.h.b16 %v1153
    %v1307 = vunpack.c.l.b16 %v1154
    %v1308 = vunpack.c.h.b16 %v1154
    %v1309 = vunpack.c.l.b16 %v1155
    %v1310 = vunpack.c.h.b16 %v1155
    %v1311 = vunpack.c.l.b16 %v1156
    %v1312 = vunpack.c.h.b16 %v1156
    %v1313 = vunpack.c.l.b16 %v1157
    %v1314 = vunpack.c.h.b16 %v1157
    %v1315 = vunpack.c.l.b16 %v1158
    %v1316 = vunpack.c.h.b16 %v1158
    %v1317 = vunpack.c.l.b16 %v1159
    %v1318 = vunpack.c.h.b16 %v1159
    %v1319 = vunpack.c.l.b16 %v1160
    %v1320 = vunpack.c.h.b16 %v1160
    %v1321 = vunpack.c.l.b16 %v1161
    %v1322 = vunpack.c.h.b16 %v1161
    %v1323 = vunpack.c.l.b16 %v1162
    %v1324 = vunpack.c.h.b16 %v1162
    %v1325 = vunpack.c.l.b16 %v1163
    %v1326 = vunpack.c.h.b16 %v1163
    %v1327 = vunpack.c.l.b16 %v1164
    %v1328 = vunpack.c.h.b16 %v1164
    %v1329 = vunpack.c.l.b16 %v1165
    %v1330 = vunpack.c.h.b16 %v1165
    %v1331 = vunpack.c.l.b16 %v1166
    %v1332 = vunpack.c.h.b16 %v1166
    %v1333 = vunpack.c.l.b16 %v1167
    %v1334 = vunpack.c.h.b16 %v1167
    %v1335 = vunpack.c.l.b16 %v1168
    %v1336 = vunpack.c.h.b16 %v1168
    %v1337 = vunpack.c.l.b16 %v1169
    %v1338 = vunpack.c.h.b16 %v1169
    %v1339 = vunpack.c.l.b16 %v1170
    %v1340 = vunpack.c.h.b16 %v1170
    %v1341 = vunpack.c.l.b16 %v1171
    %v1342 = vunpack.c.h.b16 %v1171
    %v1343 = vunpack.c.l.b16 %v1172
    %v1344 = vunpack.c.h.b16 %v1172
    %v1345 = vunpack.c.l.b16 %v1173
    %v1346 = vunpack.c.h.b16 %v1173
    %v1347 = vunpack.c.l.b16 %v1174
    %v1348 = vunpack.c.h.b16 %v1174
    %v1349 = vunpack.c.l.b16 %v1175
    %v1350 = vunpack.c.h.b16 %v1175
    %v1351 = vunpack.c.l.b16 %v1176
    %v1352 = vunpack.c.h.b16 %v1176
    %v1353 = vunpack.c.l.b16 %v1177
    %v1354 = vunpack.c.h.b16 %v1177
    %v1355 = vunpack.c.l.b16 %v1178
    %v1356 = vunpack.c.h.b16 %v1178
    %v1357 = vunpack.c.l.b16 %v1179
    %v1358 = vunpack.c.h.b16 %v1179
    %v1359 = vunpack.c.l.b16 %v1180
    %v1360 = vunpack.c.h.b16 %v1180
    %v1361 = vunpack.c.l.b16 %v1181
    %v1362 = vunpack.c.h.b16 %v1181
    %v1363 = vunpack.c.l.b16 %v1182
    %v1364 = vunpack.c.h.b16 %v1182
    %v1365 = vunpack.c.l.b16 %v1183
    %v1366 = vunpack.c.h.b16 %v1183
    %v1367 = vunpack.c.l.b16 %v1184
    %v1368 = vunpack.c.h.b16 %v1184
    %v1369 = vunpack.c.l.b16 %v1185
    %v1370 = vunpack.c.h.b16 %v1185
    %v1371 = vunpack.c.l.b16 %v1186
    %v1372 = vunpack.c.h.b16 %v1186
    %v1373 = vunpack.c.l.b16 %v1187
    %v1374 = vunpack.c.h.b16 %v1187
    %v1375 = vunpack.c.l.b16 %v1188
    %v1376 = vunpack.c.h.b16 %v1188
    %v1377 = vunpack.c.l.b16 %v1189
    %v1378 = vunpack.c.h.b16 %v1189
    %v1379 = vunpack.c.l.b16 %v1190
    %v1380 = vunpack.c.h.b16 %v1190
    %v1381 = vunpack.c.l.b16 %v1191
    %v1382 = vunpack.c.h.b16 %v1191
    %v1383 = vunpack.c.l.b16 %v1192
    %v1384 = vunpack.c.h.b16 %v1192
    %v1385 = vpack.c.b16 %v1259, %v1257
    %v1386 = vpack.c.b16 %v1260, %v1258
    %v1387 = vpack.c.b16 %v1263, %v1261
    %v1388 = vpack.c.b16 %v1264, %v1262
    %v1389 = vpack.c.b16 %v1267, %v1265
    %v1390 = vpack.c.b16 %v1268, %v1266
    %v1391 = vpack.c.b16 %v1271, %v1269
    %v1392 = vpack.c.b16 %v1272, %v1270
    %v1393 = vpack.c.b16 %v1275, %v1273
    %v1394 = vpack.c.b16 %v1276, %v1274
    %v1395 = vpack.c.b16 %v1279, %v1277
    %v1396 = vpack.c.b16 %v1280, %v1278
    %v1397 = vpack.c.b16 %v1283, %v1281
    %v1398 = vpack.c.b16 %v1284, %v1282
    %v1399 = vpack.c.b16 %v1287, %v1285
    %v1400 = vpack.c.b16 %v1288, %v1286
    %v1401 = vpack.c.b16 %v1291, %v1289
    %v1402 = vpack.c.b16 %v1292, %v1290
    %v1403 = vpack.c.b16 %v1295, %v1293
    %v1404 = vpack.c.b16 %v1296, %v1294
    %v1405 = vpack.c.b16 %v1299, %v1297
    %v1406 = vpack.c.b16 %v1300, %v1298
    %v1407 = vpack.c.b16 %v1303, %v1301
    %v1408 = vpack.c.b16 %v1304, %v1302
    %v1409 = vpack.c.b16 %v1307, %v1305
    %v1410 = vpack.c.b16 %v1308, %v1306
    %v1411 = vpack.c.b16 %v1311, %v1309
    %v1412 = vpack.c.b16 %v1312, %v1310
    %v1413 = vpack.c.b16 %v1315, %v1313
    %v1414 = vpack.c.b16 %v1316, %v1314
    %v1415 = vpack.c.b16 %v1319, %v1317
    %v1416 = vpack.c.b16 %v1320, %v1318
    %v1417 = vpack.c.b16 %v1323, %v1321
    %v1418 = vpack.c.b16 %v1324, %v1322
    %v1419 = vpack.c.b16 %v1327, %v1325
    %v1420 = vpack.c.b16 %v1328, %v1326
    %v1421 = vpack.c.b16 %v1331, %v1329
    %v1422 = vpack.c.b16 %v1332, %v1330
    %v1423 = vpack.c.b16 %v1335, %v1333
    %v1424 = vpack.c.b16 %v1336, %v1334
    %v1425 = vpack.c.b16 %v1339, %v1337
    %v1426 = vpack.c.b16 %v1340, %v1338
    %v1427 = vpack.c.b16 %v1343, %v1341
    %v1428 = vpack.c.b16 %v1344, %v1342
    %v1429 = vpack.c.b16 %v1347, %v1345
    %v1430 = vpack.c.b16 %v1348, %v1346
    %v1431 = vpack.c.b16 %v1351, %v1349
    %v1432 = vpack.c.b16 %v1352, %v1350
    %v1433 = vpack.c.b16 %v1355, %v1353
    %v1434 = vpack.c.b16 %v1356, %v1354
    %v1435 = vpack.c.b16 %v1359, %v1357
    %v1436 = vpack.c.b16 %v1360, %v1358
    %v1437 = vpack.c.b16 %v1363, %v1361
    %v1438 = vpack.c.b16 %v1364, %v1362
    %v1439 = vpack.c.b16 %v1367, %v1365
    %v1440 = vpack.c.b16 %v1368, %v1366
    %v1441 = vpack.c.b16 %v1371, %v1369
    %v1442 = vpack.c.b16 %v1372, %v1370
    %v1443 = vpack.c.b16 %v1375, %v1373
    %v1444 = vpack.c.b16 %v1376, %v1374
    %v1445 = vpack.c.b16 %v1379, %v1377
    %v1446 = vpack.c.b16 %v1380, %v1378
    %v1447 = vpack.c.b16 %v1383, %v1381
    %v1448 = vpack.c.b16 %v1384, %v1382
    %1513 = vmatpush.bf16.msra.mxu0 %v1399
    %1514 = vmatpush.bf16.msra.mxu0 %v1397
    %1515 = vmatpush.bf16.msra.mxu0 %v1395
    %1516 = vmatpush.bf16.msra.mxu0 %v1393
    %1517 = vmatpush.bf16.msra.mxu0 %v1391
    %1518 = vmatpush.bf16.msra.mxu0 %v1389
    %1519 = vmatpush.bf16.msra.mxu0 %v1387
    %1520 = vmatpush.bf16.msra.mxu0 %v1385
    %1521 = vmatmul.bf16.gmra.mxu0 %v1022
    %v1522 = vpop.f32.mrf.mxu0
    %v1523 = vadd.f32 0.0, %v1522
    %v1524 = vpop.f32.mrf.mxu0
    %v1525 = vadd.f32 0.0, %v1524
    %1526 = vmatmul.bf16.gmra.mxu0 %v1025
    %v1527 = vpop.f32.mrf.mxu0
    %v1528 = vadd.f32 0.0, %v1527
    %v1529 = vpop.f32.mrf.mxu0
    %v1530 = vadd.f32 0.0, %v1529
    %1531 = vmatmul.bf16.gmra.mxu0 %v1028
    %v1532 = vpop.f32.mrf.mxu0
    %v1533 = vadd.f32 0.0, %v1532
    %v1534 = vpop.f32.mrf.mxu0
    %1535 = vmatmul.bf16.gmra.mxu0 %v1031
    %v1536 = vpop.f32.mrf.mxu0
    %v1537 = vpop.f32.mrf.mxu0
    %1538 = vdwg.mxu0
    %1539 = vmatpush.bf16.msra.mxu0 %v1415
    %1540 = vmatpush.bf16.msra.mxu0 %v1413
    %1541 = vmatpush.bf16.msra.mxu0 %v1411
    %1542 = vmatpush.bf16.msra.mxu0 %v1409
    %1543 = vmatpush.bf16.msra.mxu0 %v1407
    %1544 = vmatpush.bf16.msra.mxu0 %v1405
    %1545 = vmatpush.bf16.msra.mxu0 %v1403
    %1546 = vmatpush.bf16.msra.mxu0 %v1401
    %1547 = vmatmul.bf16.gmra.mxu0 %v1054
    %v1548 = vpop.f32.mrf.mxu0
    %v1549 = vadd.f32 %v1523, %v1548
    %v1550 = vpop.f32.mrf.mxu0
    %v1551 = vadd.f32 %v1525, %v1550
    %1552 = vmatmul.bf16.gmra.mxu0 %v1057
    %v1553 = vpop.f32.mrf.mxu0
    %v1554 = vadd.f32 %v1528, %v1553
    %v1555 = vpop.f32.mrf.mxu0
    %v1556 = vadd.f32 %v1530, %v1555
    %1557 = vmatmul.bf16.gmra.mxu0 %v1060
    %v1558 = vpop.f32.mrf.mxu0
    %v1559 = vadd.f32 %v1533, %v1558
    %v1560 = vpop.f32.mrf.mxu0
    %1561 = vmatmul.bf16.gmra.mxu0 %v1063
    %v1562 = vpop.f32.mrf.mxu0
    %v1563 = vpop.f32.mrf.mxu0
    %1564 = vdwg.mxu0
    %1565 = vmatpush.bf16.msra.mxu0 %v1431
    %1566 = vmatpush.bf16.msra.mxu0 %v1429
    %1567 = vmatpush.bf16.msra.mxu0 %v1427
    %1568 = vmatpush.bf16.msra.mxu0 %v1425
    %1569 = vmatpush.bf16.msra.mxu0 %v1423
    %1570 = vmatpush.bf16.msra.mxu0 %v1421
    %1571 = vmatpush.bf16.msra.mxu0 %v1419
    %1572 = vmatpush.bf16.msra.mxu0 %v1417
    %1573 = vmatmul.bf16.gmra.mxu0 %v1086
    %v1574 = vpop.f32.mrf.mxu0
    %v1575 = vadd.f32 %v1549, %v1574
    %v1576 = vpop.f32.mrf.mxu0
    %v1577 = vadd.f32 %v1551, %v1576
    %1578 = vmatmul.bf16.gmra.mxu0 %v1089
    %v1579 = vpop.f32.mrf.mxu0
    %v1580 = vadd.f32 %v1554, %v1579
    %v1581 = vpop.f32.mrf.mxu0
    %v1582 = vadd.f32 %v1556, %v1581
    %1583 = vmatmul.bf16.gmra.mxu0 %v1092
    %v1584 = vpop.f32.mrf.mxu0
    %v1585 = vadd.f32 %v1559, %v1584
    %v1586 = vpop.f32.mrf.mxu0
    %1587 = vmatmul.bf16.gmra.mxu0 %v1095
    %v1588 = vpop.f32.mrf.mxu0
    %v1589 = vpop.f32.mrf.mxu0
    %1590 = vdwg.mxu0
    %1591 = vmatpush.bf16.msra.mxu0 %v1447
    %1592 = vmatpush.bf16.msra.mxu0 %v1445
    %1593 = vmatpush.bf16.msra.mxu0 %v1443
    %1594 = vmatpush.bf16.msra.mxu0 %v1441
    %1595 = vmatpush.bf16.msra.mxu0 %v1439
    %1596 = vmatpush.bf16.msra.mxu0 %v1437
    %1597 = vmatpush.bf16.msra.mxu0 %v1435
    %1598 = vmatpush.bf16.msra.mxu0 %v1433
    %1599 = vmatmul.bf16.gmra.mxu0 %v1118
    %v1600 = vpop.f32.mrf.mxu0
    %v1601 = vadd.f32 %v1575, %v1600
    %v1602 = vpop.f32.mrf.mxu0
    %v1603 = vadd.f32 %v1577, %v1602
    %1604 = vmatmul.bf16.gmra.mxu0 %v1121
    %v1605 = vpop.f32.mrf.mxu0
    %v1606 = vadd.f32 %v1580, %v1605
    %v1607 = vpop.f32.mrf.mxu0
    %v1608 = vadd.f32 %v1582, %v1607
    %1609 = vmatmul.bf16.gmra.mxu0 %v1124
    %v1610 = vpop.f32.mrf.mxu0
    %v1611 = vadd.f32 %v1585, %v1610
    %v1612 = vpop.f32.mrf.mxu0
    %1613 = vmatmul.bf16.gmra.mxu0 %v1127
    %v1614 = vpop.f32.mrf.mxu0
    %v1615 = vpop.f32.mrf.mxu0
    %1616 = vdwg.mxu0
    %1617 = vmatpush.bf16.msra.mxu0 %v1400
    %1618 = vmatpush.bf16.msra.mxu0 %v1398
    %1619 = vmatpush.bf16.msra.mxu0 %v1396
    %1620 = vmatpush.bf16.msra.mxu0 %v1394
    %1621 = vmatpush.bf16.msra.mxu0 %v1392
    %1622 = vmatpush.bf16.msra.mxu0 %v1390
    %1623 = vmatpush.bf16.msra.mxu0 %v1388
    %1624 = vmatpush.bf16.msra.mxu0 %v1386
    %1625 = vmatmul.bf16.gmra.mxu0 %v1022
    %v1626 = vpop.f32.mrf.mxu0
    %v1627 = vadd.f32 0.0, %v1626
    %v1628 = vpop.f32.mrf.mxu0
    %v1629 = vadd.f32 0.0, %v1628
    %1630 = vmatmul.bf16.gmra.mxu0 %v1025
    %v1631 = vpop.f32.mrf.mxu0
    %v1632 = vadd.f32 0.0, %v1631
    %v1633 = vpop.f32.mrf.mxu0
    %v1634 = vadd.f32 0.0, %v1633
    %1635 = vmatmul.bf16.gmra.mxu0 %v1028
    %v1636 = vpop.f32.mrf.mxu0
    %v1637 = vadd.f32 0.0, %v1636
    %v1638 = vpop.f32.mrf.mxu0
    %1639 = vmatmul.bf16.gmra.mxu0 %v1031
    %v1640 = vpop.f32.mrf.mxu0
    %v1641 = vpop.f32.mrf.mxu0
    %1642 = vdwg.mxu0
    %1643 = vmatpush.bf16.msra.mxu0 %v1416
    %1644 = vmatpush.bf16.msra.mxu0 %v1414
    %1645 = vmatpush.bf16.msra.mxu0 %v1412
    %1646 = vmatpush.bf16.msra.mxu0 %v1410
    %1647 = vmatpush.bf16.msra.mxu0 %v1408
    %1648 = vmatpush.bf16.msra.mxu0 %v1406
    %1649 = vmatpush.bf16.msra.mxu0 %v1404
    %1650 = vmatpush.bf16.msra.mxu0 %v1402
    %1651 = vmatmul.bf16.gmra.mxu0 %v1054
    %v1652 = vpop.f32.mrf.mxu0
    %v1653 = vadd.f32 %v1627, %v1652
    %v1654 = vpop.f32.mrf.mxu0
    %v1655 = vadd.f32 %v1629, %v1654
    %1656 = vmatmul.bf16.gmra.mxu0 %v1057
    %v1657 = vpop.f32.mrf.mxu0
    %v1658 = vadd.f32 %v1632, %v1657
    %v1659 = vpop.f32.mrf.mxu0
    %v1660 = vadd.f32 %v1634, %v1659
    %1661 = vmatmul.bf16.gmra.mxu0 %v1060
    %v1662 = vpop.f32.mrf.mxu0
    %v1663 = vadd.f32 %v1637, %v1662
    %v1664 = vpop.f32.mrf.mxu0
    %1665 = vmatmul.bf16.gmra.mxu0 %v1063
    %v1666 = vpop.f32.mrf.mxu0
    %v1667 = vpop.f32.mrf.mxu0
    %1668 = vdwg.mxu0
    %1669 = vmatpush.bf16.msra.mxu0 %v1432
    %1670 = vmatpush.bf16.msra.mxu0 %v1430
    %1671 = vmatpush.bf16.msra.mxu0 %v1428
    %1672 = vmatpush.bf16.msra.mxu0 %v1426
    %1673 = vmatpush.bf16.msra.mxu0 %v1424
    %1674 = vmatpush.bf16.msra.mxu0 %v1422
    %1675 = vmatpush.bf16.msra.mxu0 %v1420
    %1676 = vmatpush.bf16.msra.mxu0 %v1418
    %1677 = vmatmul.bf16.gmra.mxu0 %v1086
    %v1678 = vpop.f32.mrf.mxu0
    %v1679 = vadd.f32 %v1653, %v1678
    %v1680 = vpop.f32.mrf.mxu0
    %v1681 = vadd.f32 %v1655, %v1680
    %1682 = vmatmul.bf16.gmra.mxu0 %v1089
    %v1683 = vpop.f32.mrf.mxu0
    %v1684 = vadd.f32 %v1658, %v1683
    %v1685 = vpop.f32.mrf.mxu0
    %v1686 = vadd.f32 %v1660, %v1685
    %1687 = vmatmul.bf16.gmra.mxu0 %v1092
    %v1688 = vpop.f32.mrf.mxu0
    %v1689 = vadd.f32 %v1663, %v1688
    %v1690 = vpop.f32.mrf.mxu0
    %1691 = vmatmul.bf16.gmra.mxu0 %v1095
    %v1692 = vpop.f32.mrf.mxu0
    %v1693 = vpop.f32.mrf.mxu0
    %1694 = vdwg.mxu0
    %1695 = vmatpush.bf16.msra.mxu0 %v1448
    %1696 = vmatpush.bf16.msra.mxu0 %v1446
    %1697 = vmatpush.bf16.msra.mxu0 %v1444
    %1698 = vmatpush.bf16.msra.mxu0 %v1442
    %1699 = vmatpush.bf16.msra.mxu0 %v1440
    %1700 = vmatpush.bf16.msra.mxu0 %v1438
    %1701 = vmatpush.bf16.msra.mxu0 %v1436
    %1702 = vmatpush.bf16.msra.mxu0 %v1434
    %1703 = vmatmul.bf16.gmra.mxu0 %v1118
    %v1704 = vpop.f32.mrf.mxu0
    %v1705 = vadd.f32 %v1679, %v1704
    %v1706 = vpop.f32.mrf.mxu0
    %v1707 = vadd.f32 %v1681, %v1706
    %1708 = vmatmul.bf16.gmra.mxu0 %v1121
    %v1709 = vpop.f32.mrf.mxu0
    %v1710 = vadd.f32 %v1684, %v1709
    %v1711 = vpop.f32.mrf.mxu0
    %v1712 = vadd.f32 %v1686, %v1711
    %1713 = vmatmul.bf16.gmra.mxu0 %v1124
    %v1714 = vpop.f32.mrf.mxu0
    %v1715 = vadd.f32 %v1689, %v1714
    %v1716 = vpop.f32.mrf.mxu0
    %1717 = vmatmul.bf16.gmra.mxu0 %v1127
    %v1718 = vpop.f32.mrf.mxu0
    %v1719 = vpop.f32.mrf.mxu0
    %1720 = vdwg.mxu0
    %1721 = vrot.lane.b32.xlu0 %v1601, 64
    %v1722 = vpop.permute.xlu0 %1721
    %1723 = vrot.lane.b32.xlu0 %v1603, 64
    %v1724 = vpop.permute.xlu0 %1723
    %1725 = vrot.lane.b32.xlu0 %v1606, 64
    %v1726 = vpop.permute.xlu0 %1725
    %1727 = vrot.lane.b32.xlu0 %v1608, 64
    %v1728 = vpop.permute.xlu0 %1727
    %1729 = vrot.lane.b32.xlu0 %v1611, 64
    %v1730 = vpop.permute.xlu0 %1729
    %1731 = vrot.lane.b32.xlu0 %v1705, 64
    %v1732 = vpop.permute.xlu0 %1731
    %1733 = vrot.lane.b32.xlu0 %v1707, 64
    %v1734 = vpop.permute.xlu0 %1733
    %1735 = vrot.lane.b32.xlu0 %v1710, 64
    %v1736 = vpop.permute.xlu0 %1735
    %1737 = vrot.lane.b32.xlu0 %v1712, 64
    %v1738 = vpop.permute.xlu0 %1737
    %1739 = vrot.lane.b32.xlu0 %v1715, 64
    %v1740 = vpop.permute.xlu0 %1739
    %v1741 = vlaneseq
    %v1742 = vand.u32 %v1741, 127
    %vm1743 = vcmp.lt.s32.totalorder %v1742, 64
    %v1744 = vsel %vm1743, %v1722, %v1732
    %v1745 = vsel %vm1743, %v1724, %v1734
    %v1746 = vsel %vm1743, %v1726, %v1736
    %v1747 = vsel %vm1743, %v1728, %v1738
    %v1748 = vsel %vm1743, %v1730, %v1740
    %v1749 = vsel %vm1743, %v1732, %v1722
    %v1750 = vsel %vm1743, %v1734, %v1724
    %v1751 = vsel %vm1743, %v1736, %v1726
    %v1752 = vsel %vm1743, %v1738, %v1728
    %v1753 = vsel %vm1743, %v1740, %v1730
    %v1754 = vmax.f32 %v1601, %v1749
    %v1755 = vmax.f32 %v1705, %v1744
    %v1756 = vmax.f32 %v1603, %v1750
    %v1757 = vmax.f32 %v1707, %v1745
    %v1758 = vmax.f32 %v1606, %v1751
    %v1759 = vmax.f32 %v1710, %v1746
    %v1760 = vmax.f32 %v1608, %v1752
    %v1761 = vmax.f32 %v1712, %v1747
    %v1762 = vmax.f32 %v1611, %v1753
    %v1763 = vmax.f32 %v1715, %v1748
    %v1764 = vmax.f32 %v1754, %v1755
    %v1765 = vmax.f32 %v1756, %v1757
    %v1766 = vmax.f32 %v1758, %v1759
    %v1767 = vmax.f32 %v1760, %v1761
    %v1768 = vmax.f32 %v1762, %v1763
    %v1769 = vld [vmem:[%s5] sm:$0x1]
    %v1771 = vperm.slane %v1769, 0
    %v1773 = vadd.f32 %v1764, %v1771
    %v1774 = vadd.f32 %v1765, %v1771
    %v1775 = vadd.f32 %v1766, %v1771
    %v1776 = vadd.f32 %v1767, %v1771
    %v1777 = vadd.f32 %v1768, %v1771
    %v1778 = vmax.f32 %v1773, 0.0
    %v1779 = vmax.f32 %v1774, 0.0
    %v1780 = vmax.f32 %v1775, 0.0
    %v1781 = vmax.f32 %v1776, 0.0
    %v1782 = vmax.f32 %v1777, 0.0
    %v1783 = vpack.c.bf16 %v1778, %v1778
    %v1784 = vpack.c.bf16 %v1779, %v1779
    %v1785 = vpack.c.bf16 %v1780, %v1780
    %v1786 = vpack.c.bf16 %v1781, %v1781
    %v1787 = vpack.c.bf16 %v1782, %v1782
    %v1789 = vunpack.c.l.b16 %v1783
    %v1790 = vpack.c.b16 %v1789, %v1789
    %v1791 = vrot.slane %v1790, 1
    %1792 = vrot.lane.b32.xlu0 %v1791, 64
    %v1793 = vpop.permute.xlu0 %1792
    %v1794 = vrot.slane %v1790, 2
    %v1795 = vrot.slane %v1790, 3
    %1796 = vrot.lane.b32.xlu0 %v1795, 64
    %v1797 = vpop.permute.xlu0 %1796
    %v1799 = vunpack.c.l.b16 %v1784
    %v1800 = vpack.c.b16 %v1799, %v1799
    %v1801 = vrot.slane %v1800, 1
    %v1802 = vrot.slane %v1800, 2
    %1803 = vrot.lane.b32.xlu0 %v1802, 64
    %v1804 = vpop.permute.xlu0 %1803
    %v1805 = vrot.slane %v1800, 3
    %v1807 = vunpack.c.l.b16 %v1785
    %v1808 = vpack.c.b16 %v1807, %v1807
    %1809 = vrot.lane.b32.xlu0 %v1808, 64
    %v1810 = vpop.permute.xlu0 %1809
    %v1811 = vrot.slane %v1808, 2
    %v1812 = vrot.slane %v1808, 3
    %1813 = vrot.lane.b32.xlu0 %v1812, 64
    %v1814 = vpop.permute.xlu0 %1813
    %v1816 = vunpack.c.l.b16 %v1786
    %v1817 = vpack.c.b16 %v1816, %v1816
    %v1818 = vrot.slane %v1817, 1
    %1819 = vrot.lane.b32.xlu0 %v1818, 64
    %v1820 = vpop.permute.xlu0 %1819
    %v1821 = vrot.slane %v1817, 3
    %v1823 = vunpack.c.l.b16 %v1787
    %v1824 = vpack.c.b16 %v1823, %v1823
    %1825 = vrot.lane.b32.xlu0 %v1824, 64
    %v1826 = vpop.permute.xlu0 %1825
    %v1827 = vrot.slane %v1824, 1
    %v1828 = vrot.slane %v1824, 2
    %1829 = vrot.lane.b32.xlu0 %v1828, 64
    %v1830 = vpop.permute.xlu0 %1829
    %v1833 = vsel %vm170, %v1783, %v1793
    %v1837 = vsel %vm170, %v1794, %v1797
    %v1841 = vsel %vm170, %v1801, %v1804
    %v1845 = vsel %vm170, %v1805, %v1810
    %v1849 = vsel %vm170, %v1811, %v1814
    %v1853 = vsel %vm170, %v1786, %v1820
    %v1857 = vsel %vm170, %v1821, %v1826
    %v1861 = vsel %vm170, %v1827, %v1830
    %v1863 = vld [vmem:[%s6] sm:$0xf]
    %v1864 = vld [vmem:[%s6 + $0x4] sm:$0xf]
    %v1865 = vld [vmem:[%s6 + $0x8] sm:$0xf]
    %v1866 = vld [vmem:[%s6 + $0xc] sm:$0xf]
    %v1867 = vld [vmem:[%s6 + $0x10] sm:$0xf]
    %v1868 = vld [vmem:[%s6 + $0x14] sm:$0xf]
    %v1869 = vld [vmem:[%s6 + $0x18] sm:$0xf]
    %v1870 = vld [vmem:[%s6 + $0x1c] sm:$0xf]
    %v1871 = vld [vmem:[%s6 + $0x20] sm:$0xf]
    %v1872 = vld [vmem:[%s6 + $0x24] sm:$0xf]
    %v1873 = vld [vmem:[%s6 + $0x28] sm:$0xf]
    %v1874 = vld [vmem:[%s6 + $0x2c] sm:$0xf]
    %v1875 = vld [vmem:[%s6 + $0x30] sm:$0xf]
    %v1876 = vld [vmem:[%s6 + $0x34] sm:$0xf]
    %v1877 = vld [vmem:[%s6 + $0x38] sm:$0xf]
    %v1878 = vld [vmem:[%s6 + $0x3c] sm:$0xf]
    %v1879 = vld [vmem:[%s6 + $0x40] sm:$0xf]
    %v1880 = vld [vmem:[%s6 + $0x44] sm:$0xf]
    %v1881 = vld [vmem:[%s6 + $0x48] sm:$0xf]
    %v1882 = vld [vmem:[%s6 + $0x4c] sm:$0xf]
    %v1883 = vld [vmem:[%s6 + $0x50] sm:$0xf]
    %v1884 = vld [vmem:[%s6 + $0x54] sm:$0xf]
    %v1885 = vld [vmem:[%s6 + $0x58] sm:$0xf]
    %v1886 = vld [vmem:[%s6 + $0x5c] sm:$0xf]
    %v1887 = vld [vmem:[%s6 + $0x60] sm:$0xf]
    %v1888 = vld [vmem:[%s6 + $0x64] sm:$0xf]
    %v1889 = vld [vmem:[%s6 + $0x68] sm:$0xf]
    %v1890 = vld [vmem:[%s6 + $0x6c] sm:$0xf]
    %v1891 = vld [vmem:[%s6 + $0x70] sm:$0xf]
    %v1892 = vld [vmem:[%s6 + $0x74] sm:$0xf]
    %v1893 = vld [vmem:[%s6 + $0x78] sm:$0xf]
    %v1894 = vld [vmem:[%s6 + $0x7c] sm:$0xf]
    %v1895 = vld [vmem:[%s6 + $0x80] sm:$0xf]
    %v1896 = vld [vmem:[%s6 + $0x84] sm:$0xf]
    %v1897 = vld [vmem:[%s6 + $0x88] sm:$0xf]
    %v1898 = vld [vmem:[%s6 + $0x8c] sm:$0xf]
    %v1899 = vld [vmem:[%s6 + $0x90] sm:$0xf]
    %v1900 = vld [vmem:[%s6 + $0x94] sm:$0xf]
    %v1901 = vld [vmem:[%s6 + $0x98] sm:$0xf]
    %v1902 = vld [vmem:[%s6 + $0x9c] sm:$0xf]
    %v1903 = vld [vmem:[%s6 + $0xa0] sm:$0xf]
    %v1904 = vld [vmem:[%s6 + $0xa4] sm:$0xf]
    %v1905 = vld [vmem:[%s6 + $0xa8] sm:$0xf]
    %v1906 = vld [vmem:[%s6 + $0xac] sm:$0xf]
    %v1907 = vld [vmem:[%s6 + $0xb0] sm:$0xf]
    %v1908 = vld [vmem:[%s6 + $0xb4] sm:$0xf]
    %v1909 = vld [vmem:[%s6 + $0xb8] sm:$0xf]
    %v1910 = vld [vmem:[%s6 + $0xbc] sm:$0xf]
    %v1911 = vld [vmem:[%s6 + $0xc0] sm:$0xf]
    %v1912 = vld [vmem:[%s6 + $0xc4] sm:$0xf]
    %v1913 = vld [vmem:[%s6 + $0xc8] sm:$0xf]
    %v1914 = vld [vmem:[%s6 + $0xcc] sm:$0xf]
    %v1915 = vld [vmem:[%s6 + $0xd0] sm:$0xf]
    %v1916 = vld [vmem:[%s6 + $0xd4] sm:$0xf]
    %v1917 = vld [vmem:[%s6 + $0xd8] sm:$0xf]
    %v1918 = vld [vmem:[%s6 + $0xdc] sm:$0xf]
    %v1919 = vld [vmem:[%s6 + $0xe0] sm:$0xf]
    %v1920 = vld [vmem:[%s6 + $0xe4] sm:$0xf]
    %v1921 = vld [vmem:[%s6 + $0xe8] sm:$0xf]
    %v1922 = vld [vmem:[%s6 + $0xec] sm:$0xf]
    %v1923 = vld [vmem:[%s6 + $0xf0] sm:$0xf]
    %v1924 = vld [vmem:[%s6 + $0xf4] sm:$0xf]
    %v1925 = vld [vmem:[%s6 + $0xf8] sm:$0xf]
    %v1926 = vld [vmem:[%s6 + $0xfc] sm:$0xf]
    %v1927 = vld [vmem:[%s6 + $0x100] sm:$0xf]
    %v1928 = vld [vmem:[%s6 + $0x104] sm:$0xf]
    %v1929 = vld [vmem:[%s6 + $0x108] sm:$0xf]
    %v1930 = vld [vmem:[%s6 + $0x10c] sm:$0xf]
    %v1931 = vld [vmem:[%s6 + $0x110] sm:$0xf]
    %v1932 = vld [vmem:[%s6 + $0x114] sm:$0xf]
    %v1933 = vld [vmem:[%s6 + $0x118] sm:$0xf]
    %v1934 = vld [vmem:[%s6 + $0x11c] sm:$0xf]
    %v1935 = vld [vmem:[%s6 + $0x120] sm:$0xf]
    %v1936 = vld [vmem:[%s6 + $0x124] sm:$0xf]
    %v1937 = vld [vmem:[%s6 + $0x128] sm:$0xf]
    %v1938 = vld [vmem:[%s6 + $0x12c] sm:$0xf]
    %v1939 = vld [vmem:[%s6 + $0x130] sm:$0xf]
    %v1940 = vld [vmem:[%s6 + $0x134] sm:$0xf]
    %v1941 = vld [vmem:[%s6 + $0x138] sm:$0xf]
    %v1942 = vld [vmem:[%s6 + $0x13c] sm:$0xf]
    %v1943 = vld [vmem:[%s6 + $0x140] sm:$0xf]
    %v1944 = vld [vmem:[%s6 + $0x144] sm:$0xf]
    %v1945 = vld [vmem:[%s6 + $0x148] sm:$0xf]
    %v1946 = vld [vmem:[%s6 + $0x14c] sm:$0xf]
    %v1947 = vld [vmem:[%s6 + $0x150] sm:$0xf]
    %v1948 = vld [vmem:[%s6 + $0x154] sm:$0xf]
    %v1949 = vld [vmem:[%s6 + $0x158] sm:$0xf]
    %v1950 = vld [vmem:[%s6 + $0x15c] sm:$0xf]
    %v1951 = vld [vmem:[%s6 + $0x160] sm:$0xf]
    %v1952 = vld [vmem:[%s6 + $0x164] sm:$0xf]
    %v1953 = vld [vmem:[%s6 + $0x168] sm:$0xf]
    %v1954 = vld [vmem:[%s6 + $0x16c] sm:$0xf]
    %v1955 = vld [vmem:[%s6 + $0x170] sm:$0xf]
    %v1956 = vld [vmem:[%s6 + $0x174] sm:$0xf]
    %v1957 = vld [vmem:[%s6 + $0x178] sm:$0xf]
    %v1958 = vld [vmem:[%s6 + $0x17c] sm:$0xf]
    %v1959 = vld [vmem:[%s6 + $0x180] sm:$0xf]
    %v1960 = vld [vmem:[%s6 + $0x184] sm:$0xf]
    %v1961 = vld [vmem:[%s6 + $0x188] sm:$0xf]
    %v1962 = vld [vmem:[%s6 + $0x18c] sm:$0xf]
    %v1963 = vld [vmem:[%s6 + $0x190] sm:$0xf]
    %v1964 = vld [vmem:[%s6 + $0x194] sm:$0xf]
    %v1965 = vld [vmem:[%s6 + $0x198] sm:$0xf]
    %v1966 = vld [vmem:[%s6 + $0x19c] sm:$0xf]
    %v1967 = vld [vmem:[%s6 + $0x1a0] sm:$0xf]
    %v1968 = vld [vmem:[%s6 + $0x1a4] sm:$0xf]
    %v1969 = vld [vmem:[%s6 + $0x1a8] sm:$0xf]
    %v1970 = vld [vmem:[%s6 + $0x1ac] sm:$0xf]
    %v1971 = vld [vmem:[%s6 + $0x1b0] sm:$0xf]
    %v1972 = vld [vmem:[%s6 + $0x1b4] sm:$0xf]
    %v1973 = vld [vmem:[%s6 + $0x1b8] sm:$0xf]
    %v1974 = vld [vmem:[%s6 + $0x1bc] sm:$0xf]
    %v1975 = vld [vmem:[%s6 + $0x1c0] sm:$0xf]
    %v1976 = vld [vmem:[%s6 + $0x1c4] sm:$0xf]
    %v1977 = vld [vmem:[%s6 + $0x1c8] sm:$0xf]
    %v1978 = vld [vmem:[%s6 + $0x1cc] sm:$0xf]
    %v1979 = vld [vmem:[%s6 + $0x1d0] sm:$0xf]
    %v1980 = vld [vmem:[%s6 + $0x1d4] sm:$0xf]
    %v1981 = vld [vmem:[%s6 + $0x1d8] sm:$0xf]
    %v1982 = vld [vmem:[%s6 + $0x1dc] sm:$0xf]
    %v1983 = vld [vmem:[%s6 + $0x1e0] sm:$0xf]
    %v1984 = vld [vmem:[%s6 + $0x1e4] sm:$0xf]
    %v1985 = vld [vmem:[%s6 + $0x1e8] sm:$0xf]
    %v1986 = vld [vmem:[%s6 + $0x1ec] sm:$0xf]
    %v1987 = vld [vmem:[%s6 + $0x1f0] sm:$0xf]
    %v1988 = vld [vmem:[%s6 + $0x1f4] sm:$0xf]
    %v1989 = vld [vmem:[%s6 + $0x1f8] sm:$0xf]
    %v1990 = vld [vmem:[%s6 + $0x1fc] sm:$0xf]
    %v1991 = vld [vmem:[%s7] sm:$0x1]
    %v1993 = vperm.slane %v1991, 0
    %v2123 = vunpack.c.l.b16 %v1863
    %v2124 = vunpack.c.l.b16 %v1864
    %v2125 = vunpack.c.l.b16 %v1865
    %v2126 = vunpack.c.l.b16 %v1866
    %v2127 = vunpack.c.l.b16 %v1867
    %v2128 = vunpack.c.l.b16 %v1868
    %v2129 = vunpack.c.l.b16 %v1869
    %v2130 = vunpack.c.l.b16 %v1870
    %v2131 = vunpack.c.l.b16 %v1871
    %v2132 = vunpack.c.l.b16 %v1872
    %v2133 = vunpack.c.l.b16 %v1873
    %v2134 = vunpack.c.l.b16 %v1874
    %v2135 = vunpack.c.l.b16 %v1875
    %v2136 = vunpack.c.l.b16 %v1876
    %v2137 = vunpack.c.l.b16 %v1877
    %v2138 = vunpack.c.l.b16 %v1878
    %v2139 = vunpack.c.l.b16 %v1879
    %v2140 = vunpack.c.l.b16 %v1880
    %v2141 = vunpack.c.l.b16 %v1881
    %v2142 = vunpack.c.l.b16 %v1882
    %v2143 = vunpack.c.l.b16 %v1883
    %v2144 = vunpack.c.l.b16 %v1884
    %v2145 = vunpack.c.l.b16 %v1885
    %v2146 = vunpack.c.l.b16 %v1886
    %v2147 = vunpack.c.l.b16 %v1887
    %v2148 = vunpack.c.l.b16 %v1888
    %v2149 = vunpack.c.l.b16 %v1889
    %v2150 = vunpack.c.l.b16 %v1890
    %v2151 = vunpack.c.l.b16 %v1891
    %v2152 = vunpack.c.l.b16 %v1892
    %v2153 = vunpack.c.l.b16 %v1893
    %v2154 = vunpack.c.l.b16 %v1894
    %v2155 = vunpack.c.l.b16 %v1895
    %v2156 = vunpack.c.l.b16 %v1896
    %v2157 = vunpack.c.l.b16 %v1897
    %v2158 = vunpack.c.l.b16 %v1898
    %v2159 = vunpack.c.l.b16 %v1899
    %v2160 = vunpack.c.l.b16 %v1900
    %v2161 = vunpack.c.l.b16 %v1901
    %v2162 = vunpack.c.l.b16 %v1902
    %v2163 = vunpack.c.l.b16 %v1903
    %v2164 = vunpack.c.l.b16 %v1904
    %v2165 = vunpack.c.l.b16 %v1905
    %v2166 = vunpack.c.l.b16 %v1906
    %v2167 = vunpack.c.l.b16 %v1907
    %v2168 = vunpack.c.l.b16 %v1908
    %v2169 = vunpack.c.l.b16 %v1909
    %v2170 = vunpack.c.l.b16 %v1910
    %v2171 = vunpack.c.l.b16 %v1911
    %v2172 = vunpack.c.l.b16 %v1912
    %v2173 = vunpack.c.l.b16 %v1913
    %v2174 = vunpack.c.l.b16 %v1914
    %v2175 = vunpack.c.l.b16 %v1915
    %v2176 = vunpack.c.l.b16 %v1916
    %v2177 = vunpack.c.l.b16 %v1917
    %v2178 = vunpack.c.l.b16 %v1918
    %v2179 = vunpack.c.l.b16 %v1919
    %v2180 = vunpack.c.l.b16 %v1920
    %v2181 = vunpack.c.l.b16 %v1921
    %v2182 = vunpack.c.l.b16 %v1922
    %v2183 = vunpack.c.l.b16 %v1923
    %v2184 = vunpack.c.l.b16 %v1924
    %v2185 = vunpack.c.l.b16 %v1925
    %v2186 = vunpack.c.l.b16 %v1926
    %v2187 = vunpack.c.l.b16 %v1927
    %v2188 = vunpack.c.l.b16 %v1928
    %v2189 = vunpack.c.l.b16 %v1929
    %v2190 = vunpack.c.l.b16 %v1930
    %v2191 = vunpack.c.l.b16 %v1931
    %v2192 = vunpack.c.l.b16 %v1932
    %v2193 = vunpack.c.l.b16 %v1933
    %v2194 = vunpack.c.l.b16 %v1934
    %v2195 = vunpack.c.l.b16 %v1935
    %v2196 = vunpack.c.l.b16 %v1936
    %v2197 = vunpack.c.l.b16 %v1937
    %v2198 = vunpack.c.l.b16 %v1938
    %v2199 = vunpack.c.l.b16 %v1939
    %v2200 = vunpack.c.l.b16 %v1940
    %v2201 = vunpack.c.l.b16 %v1941
    %v2202 = vunpack.c.l.b16 %v1942
    %v2203 = vunpack.c.l.b16 %v1943
    %v2204 = vunpack.c.l.b16 %v1944
    %v2205 = vunpack.c.l.b16 %v1945
    %v2206 = vunpack.c.l.b16 %v1946
    %v2207 = vunpack.c.l.b16 %v1947
    %v2208 = vunpack.c.l.b16 %v1948
    %v2209 = vunpack.c.l.b16 %v1949
    %v2210 = vunpack.c.l.b16 %v1950
    %v2211 = vunpack.c.l.b16 %v1951
    %v2212 = vunpack.c.l.b16 %v1952
    %v2213 = vunpack.c.l.b16 %v1953
    %v2214 = vunpack.c.l.b16 %v1954
    %v2215 = vunpack.c.l.b16 %v1955
    %v2216 = vunpack.c.l.b16 %v1956
    %v2217 = vunpack.c.l.b16 %v1957
    %v2218 = vunpack.c.l.b16 %v1958
    %v2219 = vunpack.c.l.b16 %v1959
    %v2220 = vunpack.c.l.b16 %v1960
    %v2221 = vunpack.c.l.b16 %v1961
    %v2222 = vunpack.c.l.b16 %v1962
    %v2223 = vunpack.c.l.b16 %v1963
    %v2224 = vunpack.c.l.b16 %v1964
    %v2225 = vunpack.c.l.b16 %v1965
    %v2226 = vunpack.c.l.b16 %v1966
    %v2227 = vunpack.c.l.b16 %v1967
    %v2228 = vunpack.c.l.b16 %v1968
    %v2229 = vunpack.c.l.b16 %v1969
    %v2230 = vunpack.c.l.b16 %v1970
    %v2231 = vunpack.c.l.b16 %v1971
    %v2232 = vunpack.c.l.b16 %v1972
    %v2233 = vunpack.c.l.b16 %v1973
    %v2234 = vunpack.c.l.b16 %v1974
    %v2235 = vunpack.c.l.b16 %v1975
    %v2236 = vunpack.c.l.b16 %v1976
    %v2237 = vunpack.c.l.b16 %v1977
    %v2238 = vunpack.c.l.b16 %v1978
    %v2239 = vunpack.c.l.b16 %v1979
    %v2240 = vunpack.c.l.b16 %v1980
    %v2241 = vunpack.c.l.b16 %v1981
    %v2242 = vunpack.c.l.b16 %v1982
    %v2243 = vunpack.c.l.b16 %v1983
    %v2244 = vunpack.c.l.b16 %v1984
    %v2245 = vunpack.c.l.b16 %v1985
    %v2246 = vunpack.c.l.b16 %v1986
    %v2247 = vunpack.c.l.b16 %v1987
    %v2248 = vunpack.c.l.b16 %v1988
    %v2249 = vunpack.c.l.b16 %v1989
    %v2250 = vunpack.c.l.b16 %v1990
    %v2251 = vpack.c.b16 %v2124, %v2123
    %v2252 = vpack.c.b16 %v2126, %v2125
    %v2253 = vpack.c.b16 %v2128, %v2127
    %v2254 = vpack.c.b16 %v2130, %v2129
    %v2255 = vpack.c.b16 %v2132, %v2131
    %v2256 = vpack.c.b16 %v2134, %v2133
    %v2257 = vpack.c.b16 %v2136, %v2135
    %v2258 = vpack.c.b16 %v2138, %v2137
    %v2259 = vpack.c.b16 %v2140, %v2139
    %v2260 = vpack.c.b16 %v2142, %v2141
    %v2261 = vpack.c.b16 %v2144, %v2143
    %v2262 = vpack.c.b16 %v2146, %v2145
    %v2263 = vpack.c.b16 %v2148, %v2147
    %v2264 = vpack.c.b16 %v2150, %v2149
    %v2265 = vpack.c.b16 %v2152, %v2151
    %v2266 = vpack.c.b16 %v2154, %v2153
    %v2267 = vpack.c.b16 %v2156, %v2155
    %v2268 = vpack.c.b16 %v2158, %v2157
    %v2269 = vpack.c.b16 %v2160, %v2159
    %v2270 = vpack.c.b16 %v2162, %v2161
    %v2271 = vpack.c.b16 %v2164, %v2163
    %v2272 = vpack.c.b16 %v2166, %v2165
    %v2273 = vpack.c.b16 %v2168, %v2167
    %v2274 = vpack.c.b16 %v2170, %v2169
    %v2275 = vpack.c.b16 %v2172, %v2171
    %v2276 = vpack.c.b16 %v2174, %v2173
    %v2277 = vpack.c.b16 %v2176, %v2175
    %v2278 = vpack.c.b16 %v2178, %v2177
    %v2279 = vpack.c.b16 %v2180, %v2179
    %v2280 = vpack.c.b16 %v2182, %v2181
    %v2281 = vpack.c.b16 %v2184, %v2183
    %v2282 = vpack.c.b16 %v2186, %v2185
    %v2283 = vpack.c.b16 %v2188, %v2187
    %v2284 = vpack.c.b16 %v2190, %v2189
    %v2285 = vpack.c.b16 %v2192, %v2191
    %v2286 = vpack.c.b16 %v2194, %v2193
    %v2287 = vpack.c.b16 %v2196, %v2195
    %v2288 = vpack.c.b16 %v2198, %v2197
    %v2289 = vpack.c.b16 %v2200, %v2199
    %v2290 = vpack.c.b16 %v2202, %v2201
    %v2291 = vpack.c.b16 %v2204, %v2203
    %v2292 = vpack.c.b16 %v2206, %v2205
    %v2293 = vpack.c.b16 %v2208, %v2207
    %v2294 = vpack.c.b16 %v2210, %v2209
    %v2295 = vpack.c.b16 %v2212, %v2211
    %v2296 = vpack.c.b16 %v2214, %v2213
    %v2297 = vpack.c.b16 %v2216, %v2215
    %v2298 = vpack.c.b16 %v2218, %v2217
    %v2299 = vpack.c.b16 %v2220, %v2219
    %v2300 = vpack.c.b16 %v2222, %v2221
    %v2301 = vpack.c.b16 %v2224, %v2223
    %v2302 = vpack.c.b16 %v2226, %v2225
    %v2303 = vpack.c.b16 %v2228, %v2227
    %v2304 = vpack.c.b16 %v2230, %v2229
    %v2305 = vpack.c.b16 %v2232, %v2231
    %v2306 = vpack.c.b16 %v2234, %v2233
    %v2307 = vpack.c.b16 %v2236, %v2235
    %v2308 = vpack.c.b16 %v2238, %v2237
    %v2309 = vpack.c.b16 %v2240, %v2239
    %v2310 = vpack.c.b16 %v2242, %v2241
    %v2311 = vpack.c.b16 %v2244, %v2243
    %v2312 = vpack.c.b16 %v2246, %v2245
    %v2313 = vpack.c.b16 %v2248, %v2247
    %v2314 = vpack.c.b16 %v2250, %v2249
    %2379 = vmatpush.bf16.msra.mxu0 %v2258
    %2380 = vmatpush.bf16.msra.mxu0 %v2257
    %2381 = vmatpush.bf16.msra.mxu0 %v2256
    %2382 = vmatpush.bf16.msra.mxu0 %v2255
    %2383 = vmatpush.bf16.msra.mxu0 %v2254
    %2384 = vmatpush.bf16.msra.mxu0 %v2253
    %2385 = vmatpush.bf16.msra.mxu0 %v2252
    %2386 = vmatpush.bf16.msra.mxu0 %v2251
    %2387 = vmatmul.bf16.gmra.mxu0 %v1833
    %v2388 = vpop.f32.mrf.mxu0
    %v2389 = vadd.f32 %v1993, %v2388
    %v2390 = vpop.f32.mrf.mxu0
    %2391 = vdwg.mxu0
    %2392 = vmatpush.bf16.msra.mxu0 %v2266
    %2393 = vmatpush.bf16.msra.mxu0 %v2265
    %2394 = vmatpush.bf16.msra.mxu0 %v2264
    %2395 = vmatpush.bf16.msra.mxu0 %v2263
    %2396 = vmatpush.bf16.msra.mxu0 %v2262
    %2397 = vmatpush.bf16.msra.mxu0 %v2261
    %2398 = vmatpush.bf16.msra.mxu0 %v2260
    %2399 = vmatpush.bf16.msra.mxu0 %v2259
    %2400 = vmatmul.bf16.gmra.mxu0 %v1837
    %v2401 = vpop.f32.mrf.mxu0
    %v2402 = vadd.f32 %v2389, %v2401
    %v2403 = vpop.f32.mrf.mxu0
    %2404 = vdwg.mxu0
    %2405 = vmatpush.bf16.msra.mxu0 %v2274
    %2406 = vmatpush.bf16.msra.mxu0 %v2273
    %2407 = vmatpush.bf16.msra.mxu0 %v2272
    %2408 = vmatpush.bf16.msra.mxu0 %v2271
    %2409 = vmatpush.bf16.msra.mxu0 %v2270
    %2410 = vmatpush.bf16.msra.mxu0 %v2269
    %2411 = vmatpush.bf16.msra.mxu0 %v2268
    %2412 = vmatpush.bf16.msra.mxu0 %v2267
    %2413 = vmatmul.bf16.gmra.mxu0 %v1841
    %v2414 = vpop.f32.mrf.mxu0
    %v2415 = vadd.f32 %v2402, %v2414
    %v2416 = vpop.f32.mrf.mxu0
    %2417 = vdwg.mxu0
    %2418 = vmatpush.bf16.msra.mxu0 %v2282
    %2419 = vmatpush.bf16.msra.mxu0 %v2281
    %2420 = vmatpush.bf16.msra.mxu0 %v2280
    %2421 = vmatpush.bf16.msra.mxu0 %v2279
    %2422 = vmatpush.bf16.msra.mxu0 %v2278
    %2423 = vmatpush.bf16.msra.mxu0 %v2277
    %2424 = vmatpush.bf16.msra.mxu0 %v2276
    %2425 = vmatpush.bf16.msra.mxu0 %v2275
    %2426 = vmatmul.bf16.gmra.mxu0 %v1845
    %v2427 = vpop.f32.mrf.mxu0
    %v2428 = vadd.f32 %v2415, %v2427
    %v2429 = vpop.f32.mrf.mxu0
    %2430 = vdwg.mxu0
    %2431 = vmatpush.bf16.msra.mxu0 %v2290
    %2432 = vmatpush.bf16.msra.mxu0 %v2289
    %2433 = vmatpush.bf16.msra.mxu0 %v2288
    %2434 = vmatpush.bf16.msra.mxu0 %v2287
    %2435 = vmatpush.bf16.msra.mxu0 %v2286
    %2436 = vmatpush.bf16.msra.mxu0 %v2285
    %2437 = vmatpush.bf16.msra.mxu0 %v2284
    %2438 = vmatpush.bf16.msra.mxu0 %v2283
    %2439 = vmatmul.bf16.gmra.mxu0 %v1849
    %v2440 = vpop.f32.mrf.mxu0
    %v2441 = vadd.f32 %v2428, %v2440
    %v2442 = vpop.f32.mrf.mxu0
    %2443 = vdwg.mxu0
    %2444 = vmatpush.bf16.msra.mxu0 %v2298
    %2445 = vmatpush.bf16.msra.mxu0 %v2297
    %2446 = vmatpush.bf16.msra.mxu0 %v2296
    %2447 = vmatpush.bf16.msra.mxu0 %v2295
    %2448 = vmatpush.bf16.msra.mxu0 %v2294
    %2449 = vmatpush.bf16.msra.mxu0 %v2293
    %2450 = vmatpush.bf16.msra.mxu0 %v2292
    %2451 = vmatpush.bf16.msra.mxu0 %v2291
    %2452 = vmatmul.bf16.gmra.mxu0 %v1853
    %v2453 = vpop.f32.mrf.mxu0
    %v2454 = vadd.f32 %v2441, %v2453
    %v2455 = vpop.f32.mrf.mxu0
    %2456 = vdwg.mxu0
    %2457 = vmatpush.bf16.msra.mxu0 %v2306
    %2458 = vmatpush.bf16.msra.mxu0 %v2305
    %2459 = vmatpush.bf16.msra.mxu0 %v2304
    %2460 = vmatpush.bf16.msra.mxu0 %v2303
    %2461 = vmatpush.bf16.msra.mxu0 %v2302
    %2462 = vmatpush.bf16.msra.mxu0 %v2301
    %2463 = vmatpush.bf16.msra.mxu0 %v2300
    %2464 = vmatpush.bf16.msra.mxu0 %v2299
    %2465 = vmatmul.bf16.gmra.mxu0 %v1857
    %v2466 = vpop.f32.mrf.mxu0
    %v2467 = vadd.f32 %v2454, %v2466
    %v2468 = vpop.f32.mrf.mxu0
    %2469 = vdwg.mxu0
    %2470 = vmatpush.bf16.msra.mxu0 %v2314
    %2471 = vmatpush.bf16.msra.mxu0 %v2313
    %2472 = vmatpush.bf16.msra.mxu0 %v2312
    %2473 = vmatpush.bf16.msra.mxu0 %v2311
    %2474 = vmatpush.bf16.msra.mxu0 %v2310
    %2475 = vmatpush.bf16.msra.mxu0 %v2309
    %2476 = vmatpush.bf16.msra.mxu0 %v2308
    %2477 = vmatpush.bf16.msra.mxu0 %v2307
    %2478 = vmatmul.bf16.gmra.mxu0 %v1861
    %v2479 = vpop.f32.mrf.mxu0
    %v2480 = vadd.f32 %v2467, %v2479
    %v2481 = vpop.f32.mrf.mxu0
    %2482 = vdwg.mxu0
    %v2483 = vmax.f32 %v2480, 0.0
    %v2484 = vpack.c.bf16 %v2483, %v2483
    %v2485 = vld [vmem:[%s8] sm:$0xf]
    %v2486 = vld [vmem:[%s8 + $0x4] sm:$0xf]
    %v2487 = vld [vmem:[%s8 + $0x8] sm:$0xf]
    %v2488 = vld [vmem:[%s8 + $0xc] sm:$0xf]
    %v2489 = vld [vmem:[%s8 + $0x10] sm:$0xf]
    %v2490 = vld [vmem:[%s8 + $0x14] sm:$0xf]
    %v2491 = vld [vmem:[%s8 + $0x18] sm:$0xf]
    %v2492 = vld [vmem:[%s8 + $0x1c] sm:$0xf]
    %v2493 = vld [vmem:[%s8 + $0x20] sm:$0xf]
    %v2494 = vld [vmem:[%s8 + $0x24] sm:$0xf]
    %v2495 = vld [vmem:[%s8 + $0x28] sm:$0xf]
    %v2496 = vld [vmem:[%s8 + $0x2c] sm:$0xf]
    %v2497 = vld [vmem:[%s8 + $0x30] sm:$0xf]
    %v2498 = vld [vmem:[%s8 + $0x34] sm:$0xf]
    %v2499 = vld [vmem:[%s8 + $0x38] sm:$0xf]
    %v2500 = vld [vmem:[%s8 + $0x3c] sm:$0xf]
    %v2501 = vld [vmem:[%s9] sm:$0x1]
    %v2503 = vperm.slane %v2501, 0
    %v2521 = vunpack.c.l.b16 %v2485
    %v2522 = vunpack.c.l.b16 %v2486
    %v2523 = vunpack.c.l.b16 %v2487
    %v2524 = vunpack.c.l.b16 %v2488
    %v2525 = vunpack.c.l.b16 %v2489
    %v2526 = vunpack.c.l.b16 %v2490
    %v2527 = vunpack.c.l.b16 %v2491
    %v2528 = vunpack.c.l.b16 %v2492
    %v2529 = vunpack.c.l.b16 %v2493
    %v2530 = vunpack.c.l.b16 %v2494
    %v2531 = vunpack.c.l.b16 %v2495
    %v2532 = vunpack.c.l.b16 %v2496
    %v2533 = vunpack.c.l.b16 %v2497
    %v2534 = vunpack.c.l.b16 %v2498
    %v2535 = vunpack.c.l.b16 %v2499
    %v2536 = vunpack.c.l.b16 %v2500
    %v2537 = vpack.c.b16 %v2522, %v2521
    %v2538 = vpack.c.b16 %v2524, %v2523
    %v2539 = vpack.c.b16 %v2526, %v2525
    %v2540 = vpack.c.b16 %v2528, %v2527
    %v2541 = vpack.c.b16 %v2530, %v2529
    %v2542 = vpack.c.b16 %v2532, %v2531
    %v2543 = vpack.c.b16 %v2534, %v2533
    %v2544 = vpack.c.b16 %v2536, %v2535
    %2553 = vmatpush.bf16.msra.mxu0 %v2544
    %2554 = vmatpush.bf16.msra.mxu0 %v2543
    %2555 = vmatpush.bf16.msra.mxu0 %v2542
    %2556 = vmatpush.bf16.msra.mxu0 %v2541
    %2557 = vmatpush.bf16.msra.mxu0 %v2540
    %2558 = vmatpush.bf16.msra.mxu0 %v2539
    %2559 = vmatpush.bf16.msra.mxu0 %v2538
    %2560 = vmatpush.bf16.msra.mxu0 %v2537
    %2561 = vmatmul.bf16.gmra.mxu0 %v2484
    %v2562 = vpop.f32.mrf.mxu0
    %v2563 = vadd.f32 %v2503, %v2562
    %v2564 = vpop.f32.mrf.mxu0
    %2565 = vdwg.mxu0
    %v2566 = vtanh.pop %v2563
    %v2567 = vpack.c.bf16 %v2566, %v2566
    %v2568 = vld [vmem:[%s10] sm:$0xf]
    %v2569 = vld [vmem:[%s10 + $0x4] sm:$0xf]
    %v2570 = vld [vmem:[%s10 + $0x8] sm:$0xf]
    %v2571 = vld [vmem:[%s10 + $0xc] sm:$0xf]
    %v2572 = vld [vmem:[%s10 + $0x10] sm:$0xf]
    %v2573 = vld [vmem:[%s10 + $0x14] sm:$0xf]
    %v2574 = vld [vmem:[%s10 + $0x18] sm:$0xf]
    %v2575 = vld [vmem:[%s10 + $0x1c] sm:$0xf]
    %v2576 = vld [vmem:[%s10 + $0x20] sm:$0xf]
    %v2577 = vld [vmem:[%s10 + $0x24] sm:$0xf]
    %v2578 = vld [vmem:[%s10 + $0x28] sm:$0xf]
    %v2579 = vld [vmem:[%s10 + $0x2c] sm:$0xf]
    %v2580 = vld [vmem:[%s10 + $0x30] sm:$0xf]
    %v2581 = vld [vmem:[%s10 + $0x34] sm:$0xf]
    %v2582 = vld [vmem:[%s10 + $0x38] sm:$0xf]
    %v2583 = vld [vmem:[%s10 + $0x3c] sm:$0xf]
    %v2584 = vld [vmem:[%s11] sm:$0x1]
    %v2586 = vperm.slane %v2584, 0
    %v2604 = vunpack.c.l.b16 %v2568
    %v2605 = vunpack.c.l.b16 %v2569
    %v2606 = vunpack.c.l.b16 %v2570
    %v2607 = vunpack.c.l.b16 %v2571
    %v2608 = vunpack.c.l.b16 %v2572
    %v2609 = vunpack.c.l.b16 %v2573
    %v2610 = vunpack.c.l.b16 %v2574
    %v2611 = vunpack.c.l.b16 %v2575
    %v2612 = vunpack.c.l.b16 %v2576
    %v2613 = vunpack.c.l.b16 %v2577
    %v2614 = vunpack.c.l.b16 %v2578
    %v2615 = vunpack.c.l.b16 %v2579
    %v2616 = vunpack.c.l.b16 %v2580
    %v2617 = vunpack.c.l.b16 %v2581
    %v2618 = vunpack.c.l.b16 %v2582
    %v2619 = vunpack.c.l.b16 %v2583
    %v2620 = vpack.c.b16 %v2605, %v2604
    %v2621 = vpack.c.b16 %v2607, %v2606
    %v2622 = vpack.c.b16 %v2609, %v2608
    %v2623 = vpack.c.b16 %v2611, %v2610
    %v2624 = vpack.c.b16 %v2613, %v2612
    %v2625 = vpack.c.b16 %v2615, %v2614
    %v2626 = vpack.c.b16 %v2617, %v2616
    %v2627 = vpack.c.b16 %v2619, %v2618
    %2636 = vmatpush.bf16.msra.mxu0 %v2627
    %2637 = vmatpush.bf16.msra.mxu0 %v2626
    %2638 = vmatpush.bf16.msra.mxu0 %v2625
    %2639 = vmatpush.bf16.msra.mxu0 %v2624
    %2640 = vmatpush.bf16.msra.mxu0 %v2623
    %2641 = vmatpush.bf16.msra.mxu0 %v2622
    %2642 = vmatpush.bf16.msra.mxu0 %v2621
    %2643 = vmatpush.bf16.msra.mxu0 %v2620
    %2644 = vmatmul.bf16.gmra.mxu0 %v2567
    %v2645 = vpop.f32.mrf.mxu0
    %v2646 = vadd.f32 %v2586, %v2645
    %v2647 = vpop.f32.mrf.mxu0
    %2648 = vdwg.mxu0
    %2649 = vst [vmem:[#allocation2] sm:$0x3] %v2646
    // Predicated region
    $region50: #{ltc_model_forward.1} parent=1 // pred_check
      _
    $region51: #{ltc_model_forward.1} parent=1 // pred_check_branch
      %2651 = sbr.rel (0) target = $region53
    $region52: #{ltc_model_forward.1} parent=1 // pred_region
      %2653 = vsyncadd [#allocation3], 0
      %s2655 = sshll.u32 [#allocation2], 4
      %s2656 = int_to_ptr.vmem [resolvable:$true] %s2655
      %s2657 = sshll.u32 %s12, 4
      %s2658 = int_to_ptr.hbm [resolvable:$true] %s2657
      %2660 = dma.vmem_to_hbm [thread:$0]  %s2656, 32, %s2658, [#allocation3]
    $region53: #{ltc_model_forward.1} parent=1 // pred_fallthru
      _
    // Predicated region
    $region54: #{ltc_model_forward.1} parent=1 // pred_check
      _
    $region55: #{ltc_model_forward.1} parent=1 // pred_check_branch
      %2662 = sbr.rel (0) target = $region57
    $region56: #{ltc_model_forward.1} parent=1 // pred_region
      %2664 = dma.done [#allocation3], 32
    $region57: #{ltc_model_forward.1} parent=1 // pred_fallthru
      _
    %2665 = vsyncpa [#allocation3], 1

</llo_original>
